<compile_context>
chip_gen: v5e
topology: v5e:2x2
jax: 0.10.0
libtpu: 0.0.40
codegen_flags: <defaults>
</compile_context>

<pallas_src>
import functools

import jax
import jax.numpy as jnp
from jax import lax
from jax.experimental import pallas as pl
from jax.experimental.pallas import tpu as pltpu


# ----------------------------- small helpers ---------------------------------
def _round_up(v, m):
    return (v + m - 1) // m * m


def _pad_to(a, rows, cols):
    r, c = a.shape
    return jnp.pad(a, ((0, rows - r), (0, cols - c)))


# 48 MiB fits under v7x's 64 MiB/TC VMEM; on v5e/v6e (128 MiB) this can be raised
# together with tile_e (512-1024) for better HBM-roofline utilisation.
_VMEM_LIMIT = 48 * 1024 * 1024


# ------------------------------- kernels --------------------------------------
def _node_conv_kernel(s_src_ref, s_trg_ref, ef_ref, x_ref,
                      w_self_ref, w_msg_ref, w_ef_ref, b_node_ref,
                      x_new_ref):
    """GraphConv node update.  Grid (n_core, e_tiles); the scatter-add
    sum_{e:(s,t)} msg_e -> node t accumulates directly into the per-core output
    partial; core 0 adds x @ W_self at its last tile."""
    f32 = jnp.float32
    e = pl.program_id(1)

    @pl.when(e == 0)
    def _init():
        x_new_ref[...] = jnp.zeros_like(x_new_ref)

    s_src = s_src_ref[...].astype(f32)        # (TE, Np)  one-hot rows (bf16 in HBM)
    s_trg = s_trg_ref[...].astype(f32)        # (TE, Np)
    ef = ef_ref[...]                          # (TE, Cep)
    x = x_ref[...]                            # (Np, Cxp)

    x_src = jnp.dot(s_src, x, preferred_element_type=f32)               # gather x[src]
    msg = (jnp.dot(x_src, w_msg_ref[...], preferred_element_type=f32)
           + jnp.dot(ef, w_ef_ref[...], preferred_element_type=f32)
           + b_node_ref[...])                                            # (TE, Hp)
    # scatter-add by target node via trans-LHS contraction (no s_trg_t stream)
    x_new_ref[0] += jnp.dot(s_trg.T, msg, preferred_element_type=f32)   # (Np, Hp)

    @pl.when(jnp.logical_and(pl.program_id(0) == 0,
                             e == pl.num_programs(1) - 1))
    def _finalize():
        x_new_ref[0] += jnp.dot(x, w_self_ref[...], preferred_element_type=f32)


def _edge_fc_kernel(s_src_ref, s_trg_ref, ef_ref, x_new_ref,
                    w_fc_ef_ref, w_fc_src_ref, w_fc_trg_ref, w_fc_diff_ref,
                    w_fc_cos_ref, b_fc_ref, we_self_ref, b_e_ref,
                    ef_self_ref, pooled_ref):
    """fcs[i] on cat(ef, x_src, x_trg, |x_src-x_trg|, cos) (block-wise linear),
    line-graph pooling pooled[n] = sum_{e: trg[e]==n} ef_fc[e], and the edge-conv
    self term ef_fc @ We_self + b_e (folded here so kernel 3 is gather-only)."""
    f32 = jnp.float32
    e = pl.program_id(1)

    @pl.when(e == 0)
    def _init():
        pooled_ref[...] = jnp.zeros_like(pooled_ref)

    s_src = s_src_ref[...].astype(f32)
    s_trg = s_trg_ref[...].astype(f32)
    ef = ef_ref[...]
    x_new = x_new_ref[...]

    x_src = jnp.dot(s_src, x_new, preferred_element_type=f32)   # (TE, Hp)
    x_trg = jnp.dot(s_trg, x_new, preferred_element_type=f32)   # (TE, Hp)

    # CosineSimilarity(dim=1, eps=1e-8):  num / (max(|a|,eps)*max(|b|,eps))
    eps = 1e-8
    num = jnp.sum(x_src * x_trg, axis=-1, keepdims=True)
    ss = jnp.sum(x_src * x_src, axis=-1, keepdims=True)
    tt = jnp.sum(x_trg * x_trg, axis=-1, keepdims=True)
    cos = (num
           * lax.rsqrt(jnp.maximum(ss, eps * eps))
           * lax.rsqrt(jnp.maximum(tt, eps * eps)))              # (TE, 1)

    ef_fc = (jnp.dot(ef, w_fc_ef_ref[...], preferred_element_type=f32)
             + jnp.dot(x_src, w_fc_src_ref[...], preferred_element_type=f32)
             + jnp.dot(x_trg, w_fc_trg_ref[...], preferred_element_type=f32)
             + jnp.dot(jnp.abs(x_src - x_trg), w_fc_diff_ref[...],
                       preferred_element_type=f32)
             + cos * w_fc_cos_ref[...]
             + b_fc_ref[...])                                    # (TE, Hep)

    # line-graph pooling (scatter-add by target), accumulated per core
    pooled_ref[0] += jnp.dot(s_trg.T, ef_fc, preferred_element_type=f32)  # (Np, Hep)
    # edge-conv self term
    ef_self_ref[...] = (jnp.dot(ef_fc, we_self_ref[...], preferred_element_type=f32)
                        + b_e_ref[...])


def _edge_conv_kernel(s_src_ref, ef_self_ref, pooled_ref, we_nbr_ref,
                      ef_out_ref, *, n_valid, tile_rows):
    """Edge conv neighbour term via factored line graph (A_line = S_src S_trg^T):
    nbr = S_src @ pooled.  Padded edge rows are zeroed so nothing leaks between
    layers."""
    f32 = jnp.float32
    s_src = s_src_ref[...].astype(f32)
    nbr = jnp.dot(s_src, pooled_ref[...], preferred_element_type=f32)
    ef = ef_self_ref[...] + jnp.dot(nbr, we_nbr_ref[...], preferred_element_type=f32)
    row = (lax.broadcasted_iota(jnp.int32, (tile_rows, 1), 0)
           + pl.program_id(0) * tile_rows)
    ef_out_ref[...] = ef * (row < n_valid).astype(f32)


# ------------------------------ layer driver ----------------------------------
def _run_layer(x, ef, s_src, s_trg, p, *, tile_e, n_core, n_valid_edges):
    Np, Cxp = x.shape
    Ep, Cep = ef.shape
    Hp = p["w_self"].shape[1]
    Hep = p["b_fc"].shape[1]
    n_tiles = Ep // tile_e
    npc = n_tiles // n_core            # edge tiles per core

    def full2(shape):                  # grid-invariant operand, VMEM-resident
        return pl.BlockSpec(shape, lambda c, e: (0, 0))

    def etile2(cols):                  # (TILE_E, cols) tile, index varies with (c, e)
        return pl.BlockSpec((tile_e, cols), lambda c, e: (c * npc + e, 0))

    acc_params = pltpu.CompilerParams(
        dimension_semantics=("parallel", "arbitrary"),
        vmem_limit_bytes=_VMEM_LIMIT)
    par_params = pltpu.CompilerParams(
        dimension_semantics=("parallel",),
        vmem_limit_bytes=_VMEM_LIMIT)

    # ---- kernel 1: node conv (scatter-add into per-core output partials) -----
    x_new_parts = pl.pallas_call(
        _node_conv_kernel,
        grid=(n_core, npc),
        in_specs=[
            etile2(Np),            # s_src tile
            etile2(Np),            # s_trg tile
            etile2(Cep),           # ef tile
            full2((Np, Cxp)),      # x
            full2((Cxp, Hp)),      # w_self
            full2((Cxp, Hp)),      # w_msg
            full2((Cep, Hp)),      # w_ef
            full2((1, Hp)),        # b_node
        ],
        out_shape=jax.ShapeDtypeStruct((n_core, Np, Hp), jnp.float32),
        out_specs=pl.BlockSpec((1, Np, Hp), lambda c, e: (c, 0, 0)),
        compiler_params=acc_params,
    )(s_src, s_trg, ef, x, p["w_self"], p["w_msg"], p["w_ef"], p["b_node"])
    x_new = x_new_parts[0] if n_core == 1 else jnp.sum(x_new_parts, axis=0)

    # ---- kernel 2: fused concat-Linear + cosine + pooling + We_self term ------
    ef_self, pooled_parts = pl.pallas_call(
        _edge_fc_kernel,
        grid=(n_core, npc),
        in_specs=[
            etile2(Np),            # s_src tile
            etile2(Np),            # s_trg tile
            etile2(Cep),           # ef tile
            full2((Np, Hp)),       # x_new
            full2((Cep, Hep)),     # w_fc_ef
            full2((Hp, Hep)),      # w_fc_src
            full2((Hp, Hep)),      # w_fc_trg
            full2((Hp, Hep)),      # w_fc_diff
            full2((1, Hep)),       # w_fc_cos
            full2((1, Hep)),       # b_fc
            full2((Hep, Hep)),     # we_self
            full2((1, Hep)),       # b_e
        ],
        out_shape=(jax.ShapeDtypeStruct((Ep, Hep), jnp.float32),
                   jax.ShapeDtypeStruct((n_core, Np, Hep), jnp.float32)),
        out_specs=(pl.BlockSpec((tile_e, Hep), lambda c, e: (c * npc + e, 0)),
                   pl.BlockSpec((1, Np, Hep), lambda c, e: (c, 0, 0))),
        compiler_params=acc_params,
    )(s_src, s_trg, ef, x_new,
      p["w_fc_ef"], p["w_fc_src"], p["w_fc_trg"], p["w_fc_diff"],
      p["w_fc_cos"], p["b_fc"], p["we_self"], p["b_e"])
    pooled = pooled_parts[0] if n_core == 1 else jnp.sum(pooled_parts, axis=0)

    # ---- kernel 3: neighbour gather (independent E tiles, parallel over TCs) --
    ef_out = pl.pallas_call(
        functools.partial(_edge_conv_kernel,
                          n_valid=n_valid_edges, tile_rows=tile_e),
        grid=(n_tiles,),
        in_specs=[
            pl.BlockSpec((tile_e, Np), lambda t: (t, 0)),    # s_src tile
            pl.BlockSpec((tile_e, Hep), lambda t: (t, 0)),   # ef_self tile
            pl.BlockSpec((Np, Hep), lambda t: (0, 0)),       # pooled
            pl.BlockSpec((Hep, Hep), lambda t: (0, 0)),      # we_nbr
        ],
        out_shape=jax.ShapeDtypeStruct((Ep, Hep), jnp.float32),
        out_specs=pl.BlockSpec((tile_e, Hep), lambda t: (t, 0)),
        compiler_params=par_params,
    )(s_src, ef_self, pooled, p["we_nbr"])

    x_act = jnp.maximum(x_new, 0.0)   # norm=None, act=ReLU, dropout p=0 (eval)
    return x_act, ef_out


# --------------------------- parameters & padding ------------------------------
def init_params(key, in_channels, hidden_channels, in_edge_channels,
                hidden_edge_channels, num_layers):
    # TODO(synk): the PyTorch class is abstract; weight shapes follow the
    # GraphConv-style instantiation documented at the top of this file.
    params = []
    H, He = hidden_channels, hidden_edge_channels
    for i in range(num_layers):
        cx = in_channels if i == 0 else hidden_channels
        ce = in_edge_channels if i == 0 else hidden_edge_channels
        keys = jax.random.split(jax.random.fold_in(key, i), 12)

        def w(k, s):
            return jax.random.normal(k, s, jnp.float32) * 0.1

        params.append(dict(
            w_self=w(keys[0], (cx, H)),
            w_msg=w(keys[1], (cx, H)),
            w_ef=w(keys[2], (ce, H)),
            b_node=w(keys[3], (1, H)),
            w_fc_ef=w(keys[4], (ce, He)),
            w_fc_src=w(keys[5], (H, He)),
            w_fc_trg=w(keys[6], (H, He)),
            w_fc_diff=w(keys[7], (H, He)),
            w_fc_cos=w(keys[8], (1, He)),
            b_fc=w(keys[9], (1, He)),
            we_self=w(keys[10], (He, He)),
            we_nbr=w(keys[11], (He, He)),
            b_e=jnp.zeros((1, He), jnp.float32),
        ))
    return params


def _pad_params(params, cxp0, cep0, hp, hep):
    out = []
    for i, p in enumerate(params):
        cxp = cxp0 if i == 0 else hp
        cep = cep0 if i == 0 else hep
        out.append(dict(
            w_self=_pad_to(p["w_self"], cxp, hp),
            w_msg=_pad_to(p["w_msg"], cxp, hp),
            w_ef=_pad_to(p["w_ef"], cep, hp),
            b_node=_pad_to(p["b_node"], 1, hp),
            w_fc_ef=_pad_to(p["w_fc_ef"], cep, hep),
            w_fc_src=_pad_to(p["w_fc_src"], hp, hep),
            w_fc_trg=_pad_to(p["w_fc_trg"], hp, hep),
            w_fc_diff=_pad_to(p["w_fc_diff"], hp, hep),
            w_fc_cos=_pad_to(p["w_fc_cos"], 1, hep),
            b_fc=_pad_to(p["b_fc"], 1, hep),
            we_self=_pad_to(p["we_self"], hep, hep),
            we_nbr=_pad_to(p["we_nbr"], hep, hep),
            b_e=_pad_to(p["b_e"], 1, hep),
        ))
    return out


def _build_structure(edge_index, n_pad, e_pad):
    """One-hot gather/scatter matrices in bf16 (0/1 exact).  Padded (dummy) edge
    rows are all-zero so they contribute nothing to any scatter-add."""
    src, trg = edge_index[0], edge_index[1]
    e = src.shape[0]
    s_src = jax.nn.one_hot(src, n_pad, dtype=jnp.bfloat16)
    s_trg = jax.nn.one_hot(trg, n_pad, dtype=jnp.bfloat16)
    s_src = jnp.pad(s_src, ((0, e_pad - e), (0, 0)))
    s_trg = jnp.pad(s_trg, ((0, e_pad - e), (0, 0)))
    return s_src, s_trg


# -------------------------------- forward --------------------------------------
def eedgepath_mpnn_forward(x, edge_index, edge_feat, params, tile_e=256):
    N, Cx = x.shape
    E, Ce = edge_feat.shape
    H = params[0]["w_self"].shape[1]
    He = params[0]["b_fc"].shape[1]

    # lane-dense padding of every feature dim and of N (K-dim of gather matmuls);
    # E padded to a whole number of tiles per core
    Np = _round_up(N, 128)
    Cxp = _round_up(Cx, 128)
    Cep = _round_up(Ce, 128)
    Hp = _round_up(H, 128)
    Hep = _round_up(He, 128)

    tile_e = max(128, (tile_e // 128) * 128)
    tile_e = min(tile_e, _round_up(E, 128))
    n_tiles_raw = -(-E // tile_e)
    n_core = 2 if n_tiles_raw >= 2 else 1     # shard accumulators across v7x's 2 TCs
    npc = -(-n_tiles_raw // n_core)
    Ep = n_core * npc * tile_e

    s_src, s_trg = _build_structure(edge_index, Np, Ep)
    xp = _pad_to(x.astype(jnp.float32), Np, Cxp)
    efp = _pad_to(edge_feat.astype(jnp.float32), Ep, Cep)
    padded = _pad_params(params, Cxp, Cep, Hp, Hep)

    for p in padded:
        xp, efp = _run_layer(xp, efp, s_src, s_trg, p,
                             tile_e=tile_e, n_core=n_core, n_valid_edges=E)

    return efp[:E, :He]   # jk='last'  ->  forward returns final edge features


# ----------------------------- pure-JAX reference ------------------------------
def _reference_forward(x, edge_index, edge_feat, params):
    hi = lax.Precision.HIGHEST

    def mm(a, b):
        return jnp.dot(a, b, precision=hi)

    src, trg = edge_index[0], edge_index[1]
    n = x.shape[0]
    ef = edge_feat
    for p in params:
        h = p["w_self"].shape[1]
        he = p["b_fc"].shape[1]
        msg = mm(x[src], p["w_msg"]) + mm(ef, p["w_ef"]) + p["b_node"]
        agg = jnp.zeros((n, h), jnp.float32).at[trg].add(msg)
        x_new = mm(x, p["w_self"]) + agg
        x_src, x_trg = x_new[src], x_new[trg]
        eps = 1e-8
        num = jnp.sum(x_src * x_trg, -1, keepdims=True)
        n1 = jnp.maximum(jnp.sqrt(jnp.sum(x_src * x_src, -1, keepdims=True)), eps)
        n2 = jnp.maximum(jnp.sqrt(jnp.sum(x_trg * x_trg, -1, keepdims=True)), eps)
        cos = num / (n1 * n2)
        ef_fc = (mm(ef, p["w_fc_ef"]) + mm(x_src, p["w_fc_src"])
                 + mm(x_trg, p["w_fc_trg"])
                 + mm(jnp.abs(x_src - x_trg), p["w_fc_diff"])
                 + cos * p["w_fc_cos"] + p["b_fc"])
        x = jnp.maximum(x_new, 0.0)
        pooled = jnp.zeros((n, he), jnp.float32).at[trg].add(ef_fc)
        ef = mm(ef_fc, p["we_self"]) + mm(pooled[src], p["we_nbr"]) + p["b_e"]
    return ef


if __name__ == "__main__":
    key = jax.random.PRNGKey(0)
    N, E = 64, 256
    in_channels, hidden_channels = 8, 32
    in_edge_channels, hidden_edge_channels = 4, 32
    num_layers = 2

    k_x, k_s, k_t, k_ef, k_p = jax.random.split(key, 5)
    x = jax.random.normal(k_x, (N, in_channels), jnp.float32)
    src = jax.random.randint(k_s, (E,), 0, N)
    trg = jax.random.randint(k_t, (E,), 0, N)
    edge_index = jnp.stack([src, trg])                     # (2, E)
    edge_feat = jax.random.normal(k_ef, (E, in_edge_channels), jnp.float32)

    params = init_params(k_p, in_channels, hidden_channels,
                         in_edge_channels, hidden_edge_channels, num_layers)

    out = eedgepath_mpnn_forward(x, edge_index, edge_feat, params, tile_e=256)
    out = jax.block_until_ready(out)

    ref = _reference_forward(x, edge_index, edge_feat, params)
    assert out.shape == (E, hidden_edge_channels)
    assert jnp.allclose(out, ref, atol=2e-3, rtol=2e-3), float(
        jnp.max(jnp.abs(out - ref)))
    print("KERNEL_OK")
</pallas_src>

<mosaic_0001>
module attributes {stable_mosaic.version = 11 : i64} {
  func.func @_node_conv_kernel(%arg0: i32, %arg1: i32, %arg2: memref<256x128xbf16, #tpu.memory_space<vmem>>, %arg3: memref<256x128xbf16, #tpu.memory_space<vmem>>, %arg4: memref<256x128xf32, #tpu.memory_space<vmem>>, %arg5: memref<128x128xf32, #tpu.memory_space<vmem>>, %arg6: memref<128x128xf32, #tpu.memory_space<vmem>>, %arg7: memref<128x128xf32, #tpu.memory_space<vmem>>, %arg8: memref<128x128xf32, #tpu.memory_space<vmem>>, %arg9: memref<1x128xf32, #tpu.memory_space<vmem>>, %arg10: memref<1x128x128xf32, #tpu.memory_space<vmem>>) attributes {dimension_semantics = [#tpu.dimension_semantics<parallel>, #tpu.dimension_semantics<arbitrary>], iteration_bounds = array<i64: 1, 1>, scalar_prefetch = 0 : i64, scratch_operands = 0 : i64, tpu.core_type = #tpu.core_type<tc>, window_params = [{transform_indices = @transform_0, window_bounds = array<i64: 256, 128>}, {transform_indices = @transform_1, window_bounds = array<i64: 256, 128>}, {transform_indices = @transform_2, window_bounds = array<i64: 256, 128>}, {pipeline_mode = #tpu.pipeline_mode<synchronous>, transform_indices = @transform_3, window_bounds = array<i64: 128, 128>}, {pipeline_mode = #tpu.pipeline_mode<synchronous>, transform_indices = @transform_4, window_bounds = array<i64: 128, 128>}, {pipeline_mode = #tpu.pipeline_mode<synchronous>, transform_indices = @transform_5, window_bounds = array<i64: 128, 128>}, {pipeline_mode = #tpu.pipeline_mode<synchronous>, transform_indices = @transform_6, window_bounds = array<i64: 128, 128>}, {pipeline_mode = #tpu.pipeline_mode<synchronous>, transform_indices = @transform_7, window_bounds = array<i64: 1, 128>}, {transform_indices = @transform_8, window_bounds = array<i64: 1, 128, 128>}]} {
    %c0_i32 = arith.constant 0 : i32
    %0 = arith.cmpi eq, %arg1, %c0_i32 : i32
    %1 = arith.extui %0 : i1 to i32
    %c0_i32_0 = arith.constant 0 : i32
    %2 = arith.cmpi ne, %1, %c0_i32_0 : i32
    scf.if %2 {
      %cst_26 = arith.constant 0.000000e+00 : f32
      %31 = vector.broadcast %cst_26 : f32 to vector<1x128x128xf32>
      %c0_27 = arith.constant 0 : index
      %c0_28 = arith.constant 0 : index
      %c0_29 = arith.constant 0 : index
      %32 = vector.load %arg10[%c0_27, %c0_28, %c0_29] : memref<1x128x128xf32, #tpu.memory_space<vmem>>, vector<1x128x128xf32>
      tpu.vector_store %arg10[%c0_27, %c0_28, %c0_29], %31 {strides = array<i32>} : memref<1x128x128xf32, #tpu.memory_space<vmem>>, vector<1x128x128xf32>,
    } else {
    }
    %c0 = arith.constant 0 : index
    %c0_1 = arith.constant 0 : index
    %3 = vector.load %arg2[%c0, %c0_1] : memref<256x128xbf16, #tpu.memory_space<vmem>>, vector<256x128xbf16>
    %4 = arith.extf %3 : vector<256x128xbf16> to vector<256x128xf32>
    %c0_2 = arith.constant 0 : index
    %c0_3 = arith.constant 0 : index
    %5 = vector.load %arg3[%c0_2, %c0_3] : memref<256x128xbf16, #tpu.memory_space<vmem>>, vector<256x128xbf16>
    %6 = arith.extf %5 : vector<256x128xbf16> to vector<256x128xf32>
    %c0_4 = arith.constant 0 : index
    %c0_5 = arith.constant 0 : index
    %7 = vector.load %arg4[%c0_4, %c0_5] : memref<256x128xf32, #tpu.memory_space<vmem>>, vector<256x128xf32>
    %c0_6 = arith.constant 0 : index
    %c0_7 = arith.constant 0 : index
    %8 = vector.load %arg5[%c0_6, %c0_7] : memref<128x128xf32, #tpu.memory_space<vmem>>, vector<128x128xf32>
    %cst = arith.constant dense<0.000000e+00> : vector<256x128xf32>
    %9 = tpu.matmul %4, %8, %cst {dimension_numbers = #tpu.dot_dimension_numbers<[1], [0], [0], [1], [0, 0, 1, 1], [], []>} : vector<256x128xf32>, vector<128x128xf32>, vector<256x128xf32> -> vector<256x128xf32>
    %c0_8 = arith.constant 0 : index
    %c0_9 = arith.constant 0 : index
    %10 = vector.load %arg7[%c0_8, %c0_9] : memref<128x128xf32, #tpu.memory_space<vmem>>, vector<128x128xf32>
    %cst_10 = arith.constant dense<0.000000e+00> : vector<256x128xf32>
    %11 = tpu.matmul %9, %10, %cst_10 {dimension_numbers = #tpu.dot_dimension_numbers<[1], [0], [0], [1], [0, 0, 1, 1], [], []>} : vector<256x128xf32>, vector<128x128xf32>, vector<256x128xf32> -> vector<256x128xf32>
    %c0_11 = arith.constant 0 : index
    %c0_12 = arith.constant 0 : index
    %12 = vector.load %arg8[%c0_11, %c0_12] : memref<128x128xf32, #tpu.memory_space<vmem>>, vector<128x128xf32>
    %cst_13 = arith.constant dense<0.000000e+00> : vector<256x128xf32>
    %13 = tpu.matmul %7, %12, %cst_13 {dimension_numbers = #tpu.dot_dimension_numbers<[1], [0], [0], [1], [0, 0, 1, 1], [], []>} : vector<256x128xf32>, vector<128x128xf32>, vector<256x128xf32> -> vector<256x128xf32>
    %14 = arith.addf %11, %13 : vector<256x128xf32>
    %c0_14 = arith.constant 0 : index
    %c0_15 = arith.constant 0 : index
    %15 = vector.load %arg9[%c0_14, %c0_15] : memref<1x128xf32, #tpu.memory_space<vmem>>, vector<1x128xf32>
    %16 = vector.broadcast %15 : vector<1x128xf32> to vector<256x128xf32>
    %17 = arith.addf %14, %16 : vector<256x128xf32>
    %c0_16 = arith.constant 0 : index
    %c0_17 = arith.constant 0 : index
    %c0_18 = arith.constant 0 : index
    %18 = vector.load %arg10[%c0_16, %c0_17, %c0_18] : memref<1x128x128xf32, #tpu.memory_space<vmem>>, vector<1x128x128xf32>
    %19 = vector.shape_cast %18 : vector<1x128x128xf32> to vector<128x128xf32>
    %20 = tpu.transpose %6, [1, 0] : vector<256x128xf32> -> vector<128x256xf32>
    %cst_19 = arith.constant dense<0.000000e+00> : vector<128x128xf32>
    %21 = tpu.matmul %20, %17, %cst_19 {dimension_numbers = #tpu.dot_dimension_numbers<[1], [0], [0], [1], [0, 0, 1, 1], [], []>} : vector<128x256xf32>, vector<256x128xf32>, vector<128x128xf32> -> vector<128x128xf32>
    %22 = arith.addf %19, %21 : vector<128x128xf32>
    %c0_20 = arith.constant 0 : index
    %c0_21 = arith.constant 0 : index
    %c0_22 = arith.constant 0 : index
    %23 = vector.load %arg10[%c0_20, %c0_21, %c0_22] : memref<1x128x128xf32, #tpu.memory_space<vmem>>, vector<1x128x128xf32>
    %24 = vector.shape_cast %23 : vector<1x128x128xf32> to vector<128x128xf32>
    %25 = vector.shape_cast %22 : vector<128x128xf32> to vector<1x128x128xf32>
    tpu.vector_store %arg10[%c0_20, %c0_21, %c0_22], %25 {strides = array<i32>} : memref<1x128x128xf32, #tpu.memory_space<vmem>>, vector<1x128x128xf32>,
    %c0_i32_23 = arith.constant 0 : i32
    %26 = arith.cmpi eq, %arg0, %c0_i32_23 : i32
    %c0_i32_24 = arith.constant 0 : i32
    %27 = arith.cmpi eq, %arg1, %c0_i32_24 : i32
    %28 = arith.andi %26, %27 : i1
    %29 = arith.extui %28 : i1 to i32
    %c0_i32_25 = arith.constant 0 : i32
    %30 = arith.cmpi ne, %29, %c0_i32_25 : i32
    scf.if %30 {
      %c0_26 = arith.constant 0 : index
      %c0_27 = arith.constant 0 : index
      %c0_28 = arith.constant 0 : index
      %31 = vector.load %arg10[%c0_26, %c0_27, %c0_28] : memref<1x128x128xf32, #tpu.memory_space<vmem>>, vector<1x128x128xf32>
      %32 = vector.shape_cast %31 : vector<1x128x128xf32> to vector<128x128xf32>
      %c0_29 = arith.constant 0 : index
      %c0_30 = arith.constant 0 : index
      %33 = vector.load %arg6[%c0_29, %c0_30] : memref<128x128xf32, #tpu.memory_space<vmem>>, vector<128x128xf32>
      %cst_31 = arith.constant dense<0.000000e+00> : vector<128x128xf32>
      %34 = tpu.matmul %8, %33, %cst_31 {dimension_numbers = #tpu.dot_dimension_numbers<[1], [0], [0], [1], [0, 0, 1, 1], [], []>} : vector<128x128xf32>, vector<128x128xf32>, vector<128x128xf32> -> vector<128x128xf32>
      %35 = arith.addf %32, %34 : vector<128x128xf32>
      %c0_32 = arith.constant 0 : index
      %c0_33 = arith.constant 0 : index
      %c0_34 = arith.constant 0 : index
      %36 = vector.load %arg10[%c0_32, %c0_33, %c0_34] : memref<1x128x128xf32, #tpu.memory_space<vmem>>, vector<1x128x128xf32>
      %37 = vector.shape_cast %36 : vector<1x128x128xf32> to vector<128x128xf32>
      %38 = vector.shape_cast %35 : vector<128x128xf32> to vector<1x128x128xf32>
      tpu.vector_store %arg10[%c0_32, %c0_33, %c0_34], %38 {strides = array<i32>} : memref<1x128x128xf32, #tpu.memory_space<vmem>>, vector<1x128x128xf32>,
    } else {
    }
    return
  }
  func.func @transform_0(%arg0: i32, %arg1: i32) -> (i32, i32) {
    %c1_i32 = arith.constant 1 : i32
    %0 = arith.muli %arg0, %c1_i32 : i32
    %1 = arith.addi %0, %arg1 : i32
    %c0_i32 = arith.constant 0 : i32
    %c0_i32_0 = arith.constant 0 : i32
    return %1, %c0_i32 : i32, i32
  }
  func.func @transform_1(%arg0: i32, %arg1: i32) -> (i32, i32) {
    %c1_i32 = arith.constant 1 : i32
    %0 = arith.muli %arg0, %c1_i32 : i32
    %1 = arith.addi %0, %arg1 : i32
    %c0_i32 = arith.constant 0 : i32
    %c0_i32_0 = arith.constant 0 : i32
    return %1, %c0_i32 : i32, i32
  }
  func.func @transform_2(%arg0: i32, %arg1: i32) -> (i32, i32) {
    %c1_i32 = arith.constant 1 : i32
    %0 = arith.muli %arg0, %c1_i32 : i32
    %1 = arith.addi %0, %arg1 : i32
    %c0_i32 = arith.constant 0 : i32
    %c0_i32_0 = arith.constant 0 : i32
    return %1, %c0_i32 : i32, i32
  }
  func.func @transform_3(%arg0: i32, %arg1: i32) -> (i32, i32) {
    %c0_i32 = arith.constant 0 : i32
    %c0_i32_0 = arith.constant 0 : i32
    %c0_i32_1 = arith.constant 0 : i32
    return %c0_i32, %c0_i32_0 : i32, i32
  }
  func.func @transform_4(%arg0: i32, %arg1: i32) -> (i32, i32) {
    %c0_i32 = arith.constant 0 : i32
    %c0_i32_0 = arith.constant 0 : i32
    %c0_i32_1 = arith.constant 0 : i32
    return %c0_i32, %c0_i32_0 : i32, i32
  }
  func.func @transform_5(%arg0: i32, %arg1: i32) -> (i32, i32) {
    %c0_i32 = arith.constant 0 : i32
    %c0_i32_0 = arith.constant 0 : i32
    %c0_i32_1 = arith.constant 0 : i32
    return %c0_i32, %c0_i32_0 : i32, i32
  }
  func.func @transform_6(%arg0: i32, %arg1: i32) -> (i32, i32) {
    %c0_i32 = arith.constant 0 : i32
    %c0_i32_0 = arith.constant 0 : i32
    %c0_i32_1 = arith.constant 0 : i32
    return %c0_i32, %c0_i32_0 : i32, i32
  }
  func.func @transform_7(%arg0: i32, %arg1: i32) -> (i32, i32) {
    %c0_i32 = arith.constant 0 : i32
    %c0_i32_0 = arith.constant 0 : i32
    %c0_i32_1 = arith.constant 0 : i32
    return %c0_i32, %c0_i32_0 : i32, i32
  }
  func.func @transform_8(%arg0: i32, %arg1: i32) -> (i32, i32, i32) {
    %c0_i32 = arith.constant 0 : i32
    %c0_i32_0 = arith.constant 0 : i32
    %c0_i32_1 = arith.constant 0 : i32
    return %arg0, %c0_i32, %c0_i32_0 : i32, i32, i32
  }
}

</mosaic_0001>

<llo_original>
// kernel: tpu_custom_call.1
$region0: #{tpu_custom_call.1}
  #allocation0 [shape = 'u32[]', space=smem, size = 0x4, offset = 0x4, fixed_abs, tag = 'smem constant byte address 0x4 - core index']
  #allocation1 [shape = 'u32[72,128]{1,0:T(1,128)}', space=vmem, size = 0x9000, scoped, tag = 'internal scratch']
  %s0 = inlined_call_operand.hbm [shape: bf16[256,128], index: 0, kind: input, shape index: {}]
  %s1 = inlined_call_operand.hbm [shape: bf16[256,128], index: 1, kind: input, shape index: {}]
  %s2 = inlined_call_operand.hbm [shape: f32[256,128], index: 2, kind: input, shape index: {}]
  %s3 = inlined_call_operand.hbm [shape: f32[128,128], index: 3, kind: input, shape index: {}]
  %s4 = inlined_call_operand.hbm [shape: f32[128,128], index: 4, kind: input, shape index: {}]
  %s5 = inlined_call_operand.hbm [shape: f32[128,128], index: 5, kind: input, shape index: {}]
  %s6 = inlined_call_operand.hbm [shape: f32[128,128], index: 6, kind: input, shape index: {}]
  %s7 = inlined_call_operand.vmem [shape: f32[1,128], index: 7, kind: input, shape index: {}]
  %s8 = inlined_call_operand.hbm [shape: f32[1,128,128], index: 8, kind: output, shape index: {}]
  %s9 = sld [smem:[#allocation0]]
  $region78: #{tpu_custom_call.1} parent=0
    _
  %s11 = ssub.s32 1, %s9
  %s12 = scalar_select 0, %s11, %s9
  $region1: #{tpu_custom_call.1} parent=0
    #allocation2 [shape = 'u8[65536]{0}', space=vmem, size = 0x10000, scoped, tag = 'input window, operand 0, single buffered']
    #allocation3 [shape = 's32[1]{0}', space=sflag, size = 0x4, scoped, tag = 'scoped memory for tpu_custom_call.1']
    #allocation4 [shape = 's32[1]{0}', space=sflag, size = 0x4, scoped, tag = 'scoped memory for tpu_custom_call.1']
    #allocation5 [shape = 'u8[65536]{0}', space=vmem, size = 0x10000, scoped, tag = 'input window, operand 1, single buffered']
    #allocation6 [shape = 's32[1]{0}', space=sflag, size = 0x4, scoped, tag = 'scoped memory for tpu_custom_call.1']
    #allocation7 [shape = 'u8[131072]{0}', space=vmem, size = 0x20000, scoped, tag = 'input window, operand 2, single buffered']
    #allocation8 [shape = 'u8[65536]{0}', space=vmem, size = 0x10000, scoped, tag = 'input window, operand 3, single buffered']
    #allocation9 [shape = 's32[1]{0}', space=sflag, size = 0x4, scoped, tag = 'scoped memory for tpu_custom_call.1']
    #allocation10 [shape = 'u8[65536]{0}', space=vmem, size = 0x10000, scoped, tag = 'input window, operand 4, single buffered']
    #allocation11 [shape = 'u8[65536]{0}', space=vmem, size = 0x10000, scoped, tag = 'input window, operand 5, single buffered']
    #allocation12 [shape = 's32[1]{0}', space=sflag, size = 0x4, scoped, tag = 'scoped memory for tpu_custom_call.1']
    #allocation13 [shape = 'u8[65536]{0}', space=vmem, size = 0x10000, scoped, tag = 'input window, operand 6, single buffered']
    #allocation14 [shape = 'u8[65536]{0}', space=vmem, size = 0x10000, scoped, tag = 'output window, operand 0, single buffered']
    %13 = vsyncpa [#allocation3], 0
    %14 = vsyncpa [#allocation6], 0
    %15 = vsyncpa [#allocation9], 0
    %16 = vsyncpa [#allocation12], 0
    %17 = vsyncpa [#allocation4], 0
    // Predicated region
    $region2: #{tpu_custom_call.1} parent=1 // pred_check
      _
    $region3: #{tpu_custom_call.1} parent=1 // pred_check_branch
      %19 = sbr.rel (0) target = $region5
    $region4: #{tpu_custom_call.1} parent=1 // pred_region
      %s20 = sadd.s32 0, 0
      %s21 = smul.u32 32, %s20
      %23 = vsyncadd [#allocation3], 0
      %s24 = smul.addr %s21, 4
      %s25 = scalar_lea.hbm %s0, %s24
      %s26 = sshll.u32 %s25, 4
      %s27 = int_to_ptr.hbm [resolvable:$true] %s26
      %s28 = sshll.u32 [#allocation2], 4
      %s29 = int_to_ptr.vmem [resolvable:$true] %s28
      %34 = dma.hbm_to_vmem [thread:$0]  %s27, 2048, %s29, [#allocation3], 64, 64, 4
    $region5: #{tpu_custom_call.1} parent=1 // pred_fallthru
      _
    // Predicated region
    $region6: #{tpu_custom_call.1} parent=1 // pred_check
      _
    $region7: #{tpu_custom_call.1} parent=1 // pred_check_branch
      %36 = sbr.rel (0) target = $region9
    $region8: #{tpu_custom_call.1} parent=1 // pred_region
      %s37 = sadd.s32 0, 0
      %s38 = smul.u32 32, %s37
      %40 = vsyncadd [#allocation6], 0
      %s41 = smul.addr %s38, 4
      %s42 = scalar_lea.hbm %s1, %s41
      %s43 = sshll.u32 %s42, 4
      %s44 = int_to_ptr.hbm [resolvable:$true] %s43
      %s45 = sshll.u32 [#allocation5], 4
      %s46 = int_to_ptr.vmem [resolvable:$true] %s45
      %51 = dma.hbm_to_vmem [thread:$0]  %s44, 2048, %s46, [#allocation6], 64, 64, 4
    $region9: #{tpu_custom_call.1} parent=1 // pred_fallthru
      _
    // Predicated region
    $region10: #{tpu_custom_call.1} parent=1 // pred_check
      _
    $region11: #{tpu_custom_call.1} parent=1 // pred_check_branch
      %53 = sbr.rel (0) target = $region13
    $region12: #{tpu_custom_call.1} parent=1 // pred_region
      %s54 = sadd.s32 0, 0
      %s55 = smul.u32 32, %s54
      %57 = vsyncadd [#allocation6], 0
      %s58 = smul.addr %s55, 8
      %s59 = scalar_lea.hbm %s2, %s58
      %s60 = sshll.u32 %s59, 4
      %s61 = int_to_ptr.hbm [resolvable:$true] %s60
      %s62 = sshll.u32 [#allocation7], 4
      %s63 = int_to_ptr.vmem [resolvable:$true] %s62
      %68 = dma.hbm_to_vmem [thread:$0]  %s61, 4096, %s63, [#allocation6], 128, 128, 8
    $region13: #{tpu_custom_call.1} parent=1 // pred_fallthru
      _
    // Predicated region
    $region14: #{tpu_custom_call.1} parent=1 // pred_check
      _
    $region15: #{tpu_custom_call.1} parent=1 // pred_check_branch
      %70 = sbr.rel (0) target = $region17
    $region16: #{tpu_custom_call.1} parent=1 // pred_region
      %72 = vsyncadd [#allocation9], 0
      %s73 = sshll.u32 %s3, 4
      %s74 = int_to_ptr.hbm [resolvable:$true] %s73
      %s75 = sshll.u32 [#allocation8], 4
      %s76 = int_to_ptr.vmem [resolvable:$true] %s75
      %81 = dma.hbm_to_vmem [thread:$0]  %s74, 2048, %s76, [#allocation9], 128, 128, 8
    $region17: #{tpu_custom_call.1} parent=1 // pred_fallthru
      _
    // Predicated region
    $region18: #{tpu_custom_call.1} parent=1 // pred_check
      _
    $region19: #{tpu_custom_call.1} parent=1 // pred_check_branch
      %83 = sbr.rel (0) target = $region21
    $region20: #{tpu_custom_call.1} parent=1 // pred_region
      %85 = vsyncadd [#allocation9], 0
      %s86 = sshll.u32 %s4, 4
      %s87 = int_to_ptr.hbm [resolvable:$true] %s86
      %s88 = sshll.u32 [#allocation10], 4
      %s89 = int_to_ptr.vmem [resolvable:$true] %s88
      %94 = dma.hbm_to_vmem [thread:$0]  %s87, 2048, %s89, [#allocation9], 128, 128, 8
    $region21: #{tpu_custom_call.1} parent=1 // pred_fallthru
      _
    // Predicated region
    $region22: #{tpu_custom_call.1} parent=1 // pred_check
      _
    $region23: #{tpu_custom_call.1} parent=1 // pred_check_branch
      %96 = sbr.rel (0) target = $region25
    $region24: #{tpu_custom_call.1} parent=1 // pred_region
      %98 = vsyncadd [#allocation12], 0
      %s99 = sshll.u32 %s5, 4
      %s100 = int_to_ptr.hbm [resolvable:$true] %s99
      %s101 = sshll.u32 [#allocation11], 4
      %s102 = int_to_ptr.vmem [resolvable:$true] %s101
      %107 = dma.hbm_to_vmem [thread:$0]  %s100, 2048, %s102, [#allocation12], 128, 128, 8
    $region25: #{tpu_custom_call.1} parent=1 // pred_fallthru
      _
    // Predicated region
    $region26: #{tpu_custom_call.1} parent=1 // pred_check
      _
    $region27: #{tpu_custom_call.1} parent=1 // pred_check_branch
      %109 = sbr.rel (0) target = $region29
    $region28: #{tpu_custom_call.1} parent=1 // pred_region
      %111 = vsyncadd [#allocation12], 0
      %s112 = sshll.u32 %s6, 4
      %s113 = int_to_ptr.hbm [resolvable:$true] %s112
      %s114 = sshll.u32 [#allocation13], 4
      %s115 = int_to_ptr.vmem [resolvable:$true] %s114
      %120 = dma.hbm_to_vmem [thread:$0]  %s113, 2048, %s115, [#allocation12], 128, 128, 8
    $region29: #{tpu_custom_call.1} parent=1 // pred_fallthru
      _
    // Predicated region
    $region30: #{tpu_custom_call.1} parent=1 // pred_check
      _
    $region31: #{tpu_custom_call.1} parent=1 // pred_check_branch
      %122 = sbr.rel (0) target = $region33
    $region32: #{tpu_custom_call.1} parent=1 // pred_region
      _
    $region33: #{tpu_custom_call.1} parent=1 // pred_fallthru
      _
    // Predicated region
    $region34: #{tpu_custom_call.1} parent=1 // pred_check
      _
    $region35: #{tpu_custom_call.1} parent=1 // pred_check_branch
      %124 = sbr.rel (0) target = $region37
    $region36: #{tpu_custom_call.1} parent=1 // pred_region
      %126 = dma.done [#allocation3], 2048
    $region37: #{tpu_custom_call.1} parent=1 // pred_fallthru
      _
    // Predicated region
    $region38: #{tpu_custom_call.1} parent=1 // pred_check
      _
    $region39: #{tpu_custom_call.1} parent=1 // pred_check_branch
      %128 = sbr.rel (0) target = $region41
    $region40: #{tpu_custom_call.1} parent=1 // pred_region
      %130 = dma.done [#allocation6], 2048
    $region41: #{tpu_custom_call.1} parent=1 // pred_fallthru
      _
    // Predicated region
    $region42: #{tpu_custom_call.1} parent=1 // pred_check
      _
    $region43: #{tpu_custom_call.1} parent=1 // pred_check_branch
      %132 = sbr.rel (0) target = $region45
    $region44: #{tpu_custom_call.1} parent=1 // pred_region
      %134 = dma.done [#allocation6], 4096
    $region45: #{tpu_custom_call.1} parent=1 // pred_fallthru
      _
    // Predicated region
    $region46: #{tpu_custom_call.1} parent=1 // pred_check
      _
    $region47: #{tpu_custom_call.1} parent=1 // pred_check_branch
      %136 = sbr.rel (0) target = $region49
    $region48: #{tpu_custom_call.1} parent=1 // pred_region
      %138 = dma.done [#allocation9], 2048
    $region49: #{tpu_custom_call.1} parent=1 // pred_fallthru
      _
    // Predicated region
    $region50: #{tpu_custom_call.1} parent=1 // pred_check
      _
    $region51: #{tpu_custom_call.1} parent=1 // pred_check_branch
      %140 = sbr.rel (0) target = $region53
    $region52: #{tpu_custom_call.1} parent=1 // pred_region
      %142 = dma.done [#allocation9], 2048
    $region53: #{tpu_custom_call.1} parent=1 // pred_fallthru
      _
    // Predicated region
    $region54: #{tpu_custom_call.1} parent=1 // pred_check
      _
    $region55: #{tpu_custom_call.1} parent=1 // pred_check_branch
      %144 = sbr.rel (0) target = $region57
    $region56: #{tpu_custom_call.1} parent=1 // pred_region
      %146 = dma.done [#allocation12], 2048
    $region57: #{tpu_custom_call.1} parent=1 // pred_fallthru
      _
    // Predicated region
    $region58: #{tpu_custom_call.1} parent=1 // pred_check
      _
    $region59: #{tpu_custom_call.1} parent=1 // pred_check_branch
      %148 = sbr.rel (0) target = $region61
    $region60: #{tpu_custom_call.1} parent=1 // pred_region
      %150 = dma.done [#allocation12], 2048
    $region61: #{tpu_custom_call.1} parent=1 // pred_fallthru
      _
    %s151 = sadd.s32 0, 0
    %s152 = smul.u32 32, %s151
    %s153 = sadd.s32 0, 0
    %s154 = smul.u32 32, %s153
    %s155 = sadd.s32 0, 0
    %s156 = smul.u32 32, %s155
    %p157 = scmp.eq.s32.totalorder 0, 0
    // Predicated region
    $region62: #{tpu_custom_call.1} parent=1 // pred_check
      %p158 = pneg %p157
    $region63: #{tpu_custom_call.1} parent=1 // pred_check_branch
      %160 = sbr.rel (%p158) target = $region65
    $region64: #{tpu_custom_call.1} parent=1 // pred_region
      %161 = vst [vmem:[#allocation14] sm:$0xff] 0.0
      %162 = vst [vmem:[#allocation14 + $0x8] sm:$0xff] 0.0
      %163 = vst [vmem:[#allocation14 + $0x10] sm:$0xff] 0.0
      %164 = vst [vmem:[#allocation14 + $0x18] sm:$0xff] 0.0
      %165 = vst [vmem:[#allocation14 + $0x20] sm:$0xff] 0.0
      %166 = vst [vmem:[#allocation14 + $0x28] sm:$0xff] 0.0
      %167 = vst [vmem:[#allocation14 + $0x30] sm:$0xff] 0.0
      %168 = vst [vmem:[#allocation14 + $0x38] sm:$0xff] 0.0
      %169 = vst [vmem:[#allocation14 + $0x40] sm:$0xff] 0.0
      %170 = vst [vmem:[#allocation14 + $0x48] sm:$0xff] 0.0
      %171 = vst [vmem:[#allocation14 + $0x50] sm:$0xff] 0.0
      %172 = vst [vmem:[#allocation14 + $0x58] sm:$0xff] 0.0
      %173 = vst [vmem:[#allocation14 + $0x60] sm:$0xff] 0.0
      %174 = vst [vmem:[#allocation14 + $0x68] sm:$0xff] 0.0
      %175 = vst [vmem:[#allocation14 + $0x70] sm:$0xff] 0.0
      %176 = vst [vmem:[#allocation14 + $0x78] sm:$0xff] 0.0
    $region65: #{tpu_custom_call.1} parent=1 // pred_fallthru
      _
    %v177 = vld [vmem:[#allocation2] sm:$0xf]
    %v178 = vld [vmem:[#allocation2 + $0x4] sm:$0xf]
    %v179 = vld [vmem:[#allocation2 + $0x8] sm:$0xf]
    %v180 = vld [vmem:[#allocation2 + $0xc] sm:$0xf]
    %v181 = vld [vmem:[#allocation2 + $0x10] sm:$0xf]
    %v182 = vld [vmem:[#allocation2 + $0x14] sm:$0xf]
    %v183 = vld [vmem:[#allocation2 + $0x18] sm:$0xf]
    %v184 = vld [vmem:[#allocation2 + $0x1c] sm:$0xf]
    %v185 = vld [vmem:[#allocation2 + $0x20] sm:$0xf]
    %v186 = vld [vmem:[#allocation2 + $0x24] sm:$0xf]
    %v187 = vld [vmem:[#allocation2 + $0x28] sm:$0xf]
    %v188 = vld [vmem:[#allocation2 + $0x2c] sm:$0xf]
    %v189 = vld [vmem:[#allocation2 + $0x30] sm:$0xf]
    %v190 = vld [vmem:[#allocation2 + $0x34] sm:$0xf]
    %v191 = vld [vmem:[#allocation2 + $0x38] sm:$0xf]
    %v192 = vld [vmem:[#allocation2 + $0x3c] sm:$0xf]
    %v193 = vld [vmem:[#allocation2 + $0x40] sm:$0xf]
    %v194 = vld [vmem:[#allocation2 + $0x44] sm:$0xf]
    %v195 = vld [vmem:[#allocation2 + $0x48] sm:$0xf]
    %v196 = vld [vmem:[#allocation2 + $0x4c] sm:$0xf]
    %v197 = vld [vmem:[#allocation2 + $0x50] sm:$0xf]
    %v198 = vld [vmem:[#allocation2 + $0x54] sm:$0xf]
    %v199 = vld [vmem:[#allocation2 + $0x58] sm:$0xf]
    %v200 = vld [vmem:[#allocation2 + $0x5c] sm:$0xf]
    %v201 = vld [vmem:[#allocation2 + $0x60] sm:$0xf]
    %v202 = vld [vmem:[#allocation2 + $0x64] sm:$0xf]
    %v203 = vld [vmem:[#allocation2 + $0x68] sm:$0xf]
    %v204 = vld [vmem:[#allocation2 + $0x6c] sm:$0xf]
    %v205 = vld [vmem:[#allocation2 + $0x70] sm:$0xf]
    %v206 = vld [vmem:[#allocation2 + $0x74] sm:$0xf]
    %v207 = vld [vmem:[#allocation2 + $0x78] sm:$0xf]
    %v208 = vld [vmem:[#allocation2 + $0x7c] sm:$0xf]
    %v209 = vunpack.c.l.bf16 %v177
    %v210 = vunpack.c.l.bf16 %v178
    %v211 = vunpack.c.l.bf16 %v179
    %v212 = vunpack.c.l.bf16 %v180
    %v213 = vunpack.c.l.bf16 %v181
    %v214 = vunpack.c.l.bf16 %v182
    %v215 = vunpack.c.l.bf16 %v183
    %v216 = vunpack.c.l.bf16 %v184
    %v217 = vunpack.c.l.bf16 %v185
    %v218 = vunpack.c.l.bf16 %v186
    %v219 = vunpack.c.l.bf16 %v187
    %v220 = vunpack.c.l.bf16 %v188
    %v221 = vunpack.c.l.bf16 %v189
    %v222 = vunpack.c.l.bf16 %v190
    %v223 = vunpack.c.l.bf16 %v191
    %v224 = vunpack.c.l.bf16 %v192
    %v225 = vunpack.c.l.bf16 %v193
    %v226 = vunpack.c.l.bf16 %v194
    %v227 = vunpack.c.l.bf16 %v195
    %v228 = vunpack.c.l.bf16 %v196
    %v229 = vunpack.c.l.bf16 %v197
    %v230 = vunpack.c.l.bf16 %v198
    %v231 = vunpack.c.l.bf16 %v199
    %v232 = vunpack.c.l.bf16 %v200
    %v233 = vunpack.c.l.bf16 %v201
    %v234 = vunpack.c.l.bf16 %v202
    %v235 = vunpack.c.l.bf16 %v203
    %v236 = vunpack.c.l.bf16 %v204
    %v237 = vunpack.c.l.bf16 %v205
    %v238 = vunpack.c.l.bf16 %v206
    %v239 = vunpack.c.l.bf16 %v207
    %v240 = vunpack.c.l.bf16 %v208
    %v241 = vld [vmem:[#allocation5] sm:$0xf]
    %v242 = vld [vmem:[#allocation5 + $0x4] sm:$0xf]
    %v243 = vld [vmem:[#allocation5 + $0x8] sm:$0xf]
    %v244 = vld [vmem:[#allocation5 + $0xc] sm:$0xf]
    %v245 = vld [vmem:[#allocation5 + $0x10] sm:$0xf]
    %v246 = vld [vmem:[#allocation5 + $0x14] sm:$0xf]
    %v247 = vld [vmem:[#allocation5 + $0x18] sm:$0xf]
    %v248 = vld [vmem:[#allocation5 + $0x1c] sm:$0xf]
    %v249 = vld [vmem:[#allocation5 + $0x20] sm:$0xf]
    %v250 = vld [vmem:[#allocation5 + $0x24] sm:$0xf]
    %v251 = vld [vmem:[#allocation5 + $0x28] sm:$0xf]
    %v252 = vld [vmem:[#allocation5 + $0x2c] sm:$0xf]
    %v253 = vld [vmem:[#allocation5 + $0x30] sm:$0xf]
    %v254 = vld [vmem:[#allocation5 + $0x34] sm:$0xf]
    %v255 = vld [vmem:[#allocation5 + $0x38] sm:$0xf]
    %v256 = vld [vmem:[#allocation5 + $0x3c] sm:$0xf]
    %v257 = vld [vmem:[#allocation5 + $0x40] sm:$0xf]
    %v258 = vld [vmem:[#allocation5 + $0x44] sm:$0xf]
    %v259 = vld [vmem:[#allocation5 + $0x48] sm:$0xf]
    %v260 = vld [vmem:[#allocation5 + $0x4c] sm:$0xf]
    %v261 = vld [vmem:[#allocation5 + $0x50] sm:$0xf]
    %v262 = vld [vmem:[#allocation5 + $0x54] sm:$0xf]
    %v263 = vld [vmem:[#allocation5 + $0x58] sm:$0xf]
    %v264 = vld [vmem:[#allocation5 + $0x5c] sm:$0xf]
    %v265 = vld [vmem:[#allocation5 + $0x60] sm:$0xf]
    %v266 = vld [vmem:[#allocation5 + $0x64] sm:$0xf]
    %v267 = vld [vmem:[#allocation5 + $0x68] sm:$0xf]
    %v268 = vld [vmem:[#allocation5 + $0x6c] sm:$0xf]
    %v269 = vld [vmem:[#allocation5 + $0x70] sm:$0xf]
    %v270 = vld [vmem:[#allocation5 + $0x74] sm:$0xf]
    %v271 = vld [vmem:[#allocation5 + $0x78] sm:$0xf]
    %v272 = vld [vmem:[#allocation5 + $0x7c] sm:$0xf]
    %v273 = vunpack.c.l.bf16 %v241
    %v274 = vunpack.c.l.bf16 %v242
    %v275 = vunpack.c.l.bf16 %v243
    %v276 = vunpack.c.l.bf16 %v244
    %v277 = vunpack.c.l.bf16 %v245
    %v278 = vunpack.c.l.bf16 %v246
    %v279 = vunpack.c.l.bf16 %v247
    %v280 = vunpack.c.l.bf16 %v248
    %v281 = vunpack.c.l.bf16 %v249
    %v282 = vunpack.c.l.bf16 %v250
    %v283 = vunpack.c.l.bf16 %v251
    %v284 = vunpack.c.l.bf16 %v252
    %v285 = vunpack.c.l.bf16 %v253
    %v286 = vunpack.c.l.bf16 %v254
    %v287 = vunpack.c.l.bf16 %v255
    %v288 = vunpack.c.l.bf16 %v256
    %v289 = vunpack.c.l.bf16 %v257
    %v290 = vunpack.c.l.bf16 %v258
    %v291 = vunpack.c.l.bf16 %v259
    %v292 = vunpack.c.l.bf16 %v260
    %v293 = vunpack.c.l.bf16 %v261
    %v294 = vunpack.c.l.bf16 %v262
    %v295 = vunpack.c.l.bf16 %v263
    %v296 = vunpack.c.l.bf16 %v264
    %v297 = vunpack.c.l.bf16 %v265
    %v298 = vunpack.c.l.bf16 %v266
    %v299 = vunpack.c.l.bf16 %v267
    %v300 = vunpack.c.l.bf16 %v268
    %v301 = vunpack.c.l.bf16 %v269
    %v302 = vunpack.c.l.bf16 %v270
    %v303 = vunpack.c.l.bf16 %v271
    %v304 = vunpack.c.l.bf16 %v272
    %v305 = vld [vmem:[#allocation7] sm:$0xff]
    %v306 = vld [vmem:[#allocation7 + $0x8] sm:$0xff]
    %v307 = vld [vmem:[#allocation7 + $0x10] sm:$0xff]
    %v308 = vld [vmem:[#allocation7 + $0x18] sm:$0xff]
    %v309 = vld [vmem:[#allocation7 + $0x20] sm:$0xff]
    %v310 = vld [vmem:[#allocation7 + $0x28] sm:$0xff]
    %v311 = vld [vmem:[#allocation7 + $0x30] sm:$0xff]
    %v312 = vld [vmem:[#allocation7 + $0x38] sm:$0xff]
    %v313 = vld [vmem:[#allocation7 + $0x40] sm:$0xff]
    %v314 = vld [vmem:[#allocation7 + $0x48] sm:$0xff]
    %v315 = vld [vmem:[#allocation7 + $0x50] sm:$0xff]
    %v316 = vld [vmem:[#allocation7 + $0x58] sm:$0xff]
    %v317 = vld [vmem:[#allocation7 + $0x60] sm:$0xff]
    %v318 = vld [vmem:[#allocation7 + $0x68] sm:$0xff]
    %v319 = vld [vmem:[#allocation7 + $0x70] sm:$0xff]
    %v320 = vld [vmem:[#allocation7 + $0x78] sm:$0xff]
    %v321 = vld [vmem:[#allocation7 + $0x80] sm:$0xff]
    %v322 = vld [vmem:[#allocation7 + $0x88] sm:$0xff]
    %v323 = vld [vmem:[#allocation7 + $0x90] sm:$0xff]
    %v324 = vld [vmem:[#allocation7 + $0x98] sm:$0xff]
    %v325 = vld [vmem:[#allocation7 + $0xa0] sm:$0xff]
    %v326 = vld [vmem:[#allocation7 + $0xa8] sm:$0xff]
    %v327 = vld [vmem:[#allocation7 + $0xb0] sm:$0xff]
    %v328 = vld [vmem:[#allocation7 + $0xb8] sm:$0xff]
    %v329 = vld [vmem:[#allocation7 + $0xc0] sm:$0xff]
    %v330 = vld [vmem:[#allocation7 + $0xc8] sm:$0xff]
    %v331 = vld [vmem:[#allocation7 + $0xd0] sm:$0xff]
    %v332 = vld [vmem:[#allocation7 + $0xd8] sm:$0xff]
    %v333 = vld [vmem:[#allocation7 + $0xe0] sm:$0xff]
    %v334 = vld [vmem:[#allocation7 + $0xe8] sm:$0xff]
    %v335 = vld [vmem:[#allocation7 + $0xf0] sm:$0xff]
    %v336 = vld [vmem:[#allocation7 + $0xf8] sm:$0xff]
    %v337 = vld [vmem:[#allocation8] sm:$0xff]
    %v338 = vld [vmem:[#allocation8 + $0x8] sm:$0xff]
    %v339 = vld [vmem:[#allocation8 + $0x10] sm:$0xff]
    %v340 = vld [vmem:[#allocation8 + $0x18] sm:$0xff]
    %v341 = vld [vmem:[#allocation8 + $0x20] sm:$0xff]
    %v342 = vld [vmem:[#allocation8 + $0x28] sm:$0xff]
    %v343 = vld [vmem:[#allocation8 + $0x30] sm:$0xff]
    %v344 = vld [vmem:[#allocation8 + $0x38] sm:$0xff]
    %v345 = vld [vmem:[#allocation8 + $0x40] sm:$0xff]
    %v346 = vld [vmem:[#allocation8 + $0x48] sm:$0xff]
    %v347 = vld [vmem:[#allocation8 + $0x50] sm:$0xff]
    %v348 = vld [vmem:[#allocation8 + $0x58] sm:$0xff]
    %v349 = vld [vmem:[#allocation8 + $0x60] sm:$0xff]
    %v350 = vld [vmem:[#allocation8 + $0x68] sm:$0xff]
    %v351 = vld [vmem:[#allocation8 + $0x70] sm:$0xff]
    %v352 = vld [vmem:[#allocation8 + $0x78] sm:$0xff]
    %353 = vmatpush.msra.mxu0 %v352
    %354 = vmatpush.msra.mxu0 %v351
    %355 = vmatpush.msra.mxu0 %v350
    %356 = vmatpush.msra.mxu0 %v349
    %357 = vmatpush.msra.mxu0 %v348
    %358 = vmatpush.msra.mxu0 %v347
    %359 = vmatpush.msra.mxu0 %v346
    %360 = vmatpush.msra.mxu0 %v345
    %361 = vmatpush.msra.mxu0 %v344
    %362 = vmatpush.msra.mxu0 %v343
    %363 = vmatpush.msra.mxu0 %v342
    %364 = vmatpush.msra.mxu0 %v341
    %365 = vmatpush.msra.mxu0 %v340
    %366 = vmatpush.msra.mxu0 %v339
    %367 = vmatpush.msra.mxu0 %v338
    %368 = vmatpush.msra.mxu0 %v337
    %369 = vmatmul.f32.gmra.mxu0 %v209
    %v370 = vpop.f32.mrf.mxu0
    %v371 = vadd.f32 0.0, %v370
    %372 = vmatmul.f32.gmra.mxu0 %v210
    %v373 = vpop.f32.mrf.mxu0
    %v374 = vadd.f32 0.0, %v373
    %375 = vmatmul.f32.gmra.mxu0 %v211
    %v376 = vpop.f32.mrf.mxu0
    %v377 = vadd.f32 0.0, %v376
    %378 = vmatmul.f32.gmra.mxu0 %v212
    %v379 = vpop.f32.mrf.mxu0
    %v380 = vadd.f32 0.0, %v379
    %381 = vmatmul.f32.gmra.mxu0 %v213
    %v382 = vpop.f32.mrf.mxu0
    %v383 = vadd.f32 0.0, %v382
    %384 = vmatmul.f32.gmra.mxu0 %v214
    %v385 = vpop.f32.mrf.mxu0
    %v386 = vadd.f32 0.0, %v385
    %387 = vmatmul.f32.gmra.mxu0 %v215
    %v388 = vpop.f32.mrf.mxu0
    %v389 = vadd.f32 0.0, %v388
    %390 = vmatmul.f32.gmra.mxu0 %v216
    %v391 = vpop.f32.mrf.mxu0
    %v392 = vadd.f32 0.0, %v391
    %393 = vmatmul.f32.gmra.mxu0 %v217
    %v394 = vpop.f32.mrf.mxu0
    %v395 = vadd.f32 0.0, %v394
    %396 = vmatmul.f32.gmra.mxu0 %v218
    %v397 = vpop.f32.mrf.mxu0
    %v398 = vadd.f32 0.0, %v397
    %399 = vmatmul.f32.gmra.mxu0 %v219
    %v400 = vpop.f32.mrf.mxu0
    %v401 = vadd.f32 0.0, %v400
    %402 = vmatmul.f32.gmra.mxu0 %v220
    %v403 = vpop.f32.mrf.mxu0
    %v404 = vadd.f32 0.0, %v403
    %405 = vmatmul.f32.gmra.mxu0 %v221
    %v406 = vpop.f32.mrf.mxu0
    %v407 = vadd.f32 0.0, %v406
    %408 = vmatmul.f32.gmra.mxu0 %v222
    %v409 = vpop.f32.mrf.mxu0
    %v410 = vadd.f32 0.0, %v409
    %411 = vmatmul.f32.gmra.mxu0 %v223
    %v412 = vpop.f32.mrf.mxu0
    %v413 = vadd.f32 0.0, %v412
    %414 = vmatmul.f32.gmra.mxu0 %v224
    %v415 = vpop.f32.mrf.mxu0
    %v416 = vadd.f32 0.0, %v415
    %417 = vmatmul.f32.gmra.mxu0 %v225
    %v418 = vpop.f32.mrf.mxu0
    %v419 = vadd.f32 0.0, %v418
    %420 = vmatmul.f32.gmra.mxu0 %v226
    %v421 = vpop.f32.mrf.mxu0
    %v422 = vadd.f32 0.0, %v421
    %423 = vmatmul.f32.gmra.mxu0 %v227
    %v424 = vpop.f32.mrf.mxu0
    %v425 = vadd.f32 0.0, %v424
    %426 = vmatmul.f32.gmra.mxu0 %v228
    %v427 = vpop.f32.mrf.mxu0
    %v428 = vadd.f32 0.0, %v427
    %429 = vmatmul.f32.gmra.mxu0 %v229
    %v430 = vpop.f32.mrf.mxu0
    %v431 = vadd.f32 0.0, %v430
    %432 = vmatmul.f32.gmra.mxu0 %v230
    %v433 = vpop.f32.mrf.mxu0
    %v434 = vadd.f32 0.0, %v433
    %435 = vmatmul.f32.gmra.mxu0 %v231
    %v436 = vpop.f32.mrf.mxu0
    %v437 = vadd.f32 0.0, %v436
    %438 = vmatmul.f32.gmra.mxu0 %v232
    %v439 = vpop.f32.mrf.mxu0
    %v440 = vadd.f32 0.0, %v439
    %441 = vmatmul.f32.gmra.mxu0 %v233
    %v442 = vpop.f32.mrf.mxu0
    %v443 = vadd.f32 0.0, %v442
    %444 = vmatmul.f32.gmra.mxu0 %v234
    %v445 = vpop.f32.mrf.mxu0
    %v446 = vadd.f32 0.0, %v445
    %447 = vmatmul.f32.gmra.mxu0 %v235
    %v448 = vpop.f32.mrf.mxu0
    %v449 = vadd.f32 0.0, %v448
    %450 = vmatmul.f32.gmra.mxu0 %v236
    %v451 = vpop.f32.mrf.mxu0
    %v452 = vadd.f32 0.0, %v451
    %453 = vmatmul.f32.gmra.mxu0 %v237
    %v454 = vpop.f32.mrf.mxu0
    %v455 = vadd.f32 0.0, %v454
    %456 = vmatmul.f32.gmra.mxu0 %v238
    %v457 = vpop.f32.mrf.mxu0
    %v458 = vadd.f32 0.0, %v457
    %459 = vmatmul.f32.gmra.mxu0 %v239
    %v460 = vpop.f32.mrf.mxu0
    %v461 = vadd.f32 0.0, %v460
    %462 = vmatmul.f32.gmra.mxu0 %v240
    %v463 = vpop.f32.mrf.mxu0
    %v464 = vadd.f32 0.0, %v463
    %465 = vdwg.mxu0
    %v466 = vld [vmem:[#allocation11] sm:$0xff]
    %v467 = vld [vmem:[#allocation11 + $0x8] sm:$0xff]
    %v468 = vld [vmem:[#allocation11 + $0x10] sm:$0xff]
    %v469 = vld [vmem:[#allocation11 + $0x18] sm:$0xff]
    %v470 = vld [vmem:[#allocation11 + $0x20] sm:$0xff]
    %v471 = vld [vmem:[#allocation11 + $0x28] sm:$0xff]
    %v472 = vld [vmem:[#allocation11 + $0x30] sm:$0xff]
    %v473 = vld [vmem:[#allocation11 + $0x38] sm:$0xff]
    %v474 = vld [vmem:[#allocation11 + $0x40] sm:$0xff]
    %v475 = vld [vmem:[#allocation11 + $0x48] sm:$0xff]
    %v476 = vld [vmem:[#allocation11 + $0x50] sm:$0xff]
    %v477 = vld [vmem:[#allocation11 + $0x58] sm:$0xff]
    %v478 = vld [vmem:[#allocation11 + $0x60] sm:$0xff]
    %v479 = vld [vmem:[#allocation11 + $0x68] sm:$0xff]
    %v480 = vld [vmem:[#allocation11 + $0x70] sm:$0xff]
    %v481 = vld [vmem:[#allocation11 + $0x78] sm:$0xff]
    %v482 = vld [vmem:[#allocation13] sm:$0xff]
    %v483 = vld [vmem:[#allocation13 + $0x8] sm:$0xff]
    %v484 = vld [vmem:[#allocation13 + $0x10] sm:$0xff]
    %v485 = vld [vmem:[#allocation13 + $0x18] sm:$0xff]
    %v486 = vld [vmem:[#allocation13 + $0x20] sm:$0xff]
    %v487 = vld [vmem:[#allocation13 + $0x28] sm:$0xff]
    %v488 = vld [vmem:[#allocation13 + $0x30] sm:$0xff]
    %v489 = vld [vmem:[#allocation13 + $0x38] sm:$0xff]
    %v490 = vld [vmem:[#allocation13 + $0x40] sm:$0xff]
    %v491 = vld [vmem:[#allocation13 + $0x48] sm:$0xff]
    %v492 = vld [vmem:[#allocation13 + $0x50] sm:$0xff]
    %v493 = vld [vmem:[#allocation13 + $0x58] sm:$0xff]
    %v494 = vld [vmem:[#allocation13 + $0x60] sm:$0xff]
    %v495 = vld [vmem:[#allocation13 + $0x68] sm:$0xff]
    %v496 = vld [vmem:[#allocation13 + $0x70] sm:$0xff]
    %v497 = vld [vmem:[#allocation13 + $0x78] sm:$0xff]
    %498 = vmatpush.msra.mxu0 %v497
    %499 = vmatpush.msra.mxu0 %v496
    %500 = vmatpush.msra.mxu0 %v495
    %501 = vmatpush.msra.mxu0 %v494
    %502 = vmatpush.msra.mxu0 %v493
    %503 = vmatpush.msra.mxu0 %v492
    %504 = vmatpush.msra.mxu0 %v491
    %505 = vmatpush.msra.mxu0 %v490
    %506 = vmatpush.msra.mxu0 %v489
    %507 = vmatpush.msra.mxu0 %v488
    %508 = vmatpush.msra.mxu0 %v487
    %509 = vmatpush.msra.mxu0 %v486
    %510 = vmatpush.msra.mxu0 %v485
    %511 = vmatpush.msra.mxu0 %v484
    %512 = vmatpush.msra.mxu0 %v483
    %513 = vmatpush.msra.mxu0 %v482
    %514 = vmatmul.f32.gmra.mxu0 %v305
    %v515 = vpop.f32.mrf.mxu0
    %v516 = vadd.f32 0.0, %v515
    %517 = vmatmul.f32.gmra.mxu0 %v306
    %v518 = vpop.f32.mrf.mxu0
    %v519 = vadd.f32 0.0, %v518
    %520 = vmatmul.f32.gmra.mxu0 %v307
    %v521 = vpop.f32.mrf.mxu0
    %v522 = vadd.f32 0.0, %v521
    %523 = vmatmul.f32.gmra.mxu0 %v308
    %v524 = vpop.f32.mrf.mxu0
    %v525 = vadd.f32 0.0, %v524
    %526 = vmatmul.f32.gmra.mxu0 %v309
    %v527 = vpop.f32.mrf.mxu0
    %v528 = vadd.f32 0.0, %v527
    %529 = vmatmul.f32.gmra.mxu0 %v310
    %v530 = vpop.f32.mrf.mxu0
    %v531 = vadd.f32 0.0, %v530
    %532 = vmatmul.f32.gmra.mxu0 %v311
    %v533 = vpop.f32.mrf.mxu0
    %v534 = vadd.f32 0.0, %v533
    %535 = vmatmul.f32.gmra.mxu0 %v312
    %v536 = vpop.f32.mrf.mxu0
    %v537 = vadd.f32 0.0, %v536
    %538 = vmatmul.f32.gmra.mxu0 %v313
    %v539 = vpop.f32.mrf.mxu0
    %v540 = vadd.f32 0.0, %v539
    %541 = vmatmul.f32.gmra.mxu0 %v314
    %v542 = vpop.f32.mrf.mxu0
    %v543 = vadd.f32 0.0, %v542
    %544 = vmatmul.f32.gmra.mxu0 %v315
    %v545 = vpop.f32.mrf.mxu0
    %v546 = vadd.f32 0.0, %v545
    %547 = vmatmul.f32.gmra.mxu0 %v316
    %v548 = vpop.f32.mrf.mxu0
    %v549 = vadd.f32 0.0, %v548
    %550 = vmatmul.f32.gmra.mxu0 %v317
    %v551 = vpop.f32.mrf.mxu0
    %v552 = vadd.f32 0.0, %v551
    %553 = vmatmul.f32.gmra.mxu0 %v318
    %v554 = vpop.f32.mrf.mxu0
    %v555 = vadd.f32 0.0, %v554
    %556 = vmatmul.f32.gmra.mxu0 %v319
    %v557 = vpop.f32.mrf.mxu0
    %v558 = vadd.f32 0.0, %v557
    %559 = vmatmul.f32.gmra.mxu0 %v320
    %v560 = vpop.f32.mrf.mxu0
    %v561 = vadd.f32 0.0, %v560
    %562 = vmatmul.f32.gmra.mxu0 %v321
    %v563 = vpop.f32.mrf.mxu0
    %v564 = vadd.f32 0.0, %v563
    %565 = vmatmul.f32.gmra.mxu0 %v322
    %v566 = vpop.f32.mrf.mxu0
    %v567 = vadd.f32 0.0, %v566
    %568 = vmatmul.f32.gmra.mxu0 %v323
    %v569 = vpop.f32.mrf.mxu0
    %v570 = vadd.f32 0.0, %v569
    %571 = vmatmul.f32.gmra.mxu0 %v324
    %v572 = vpop.f32.mrf.mxu0
    %v573 = vadd.f32 0.0, %v572
    %574 = vmatmul.f32.gmra.mxu0 %v325
    %v575 = vpop.f32.mrf.mxu0
    %v576 = vadd.f32 0.0, %v575
    %577 = vmatmul.f32.gmra.mxu0 %v326
    %v578 = vpop.f32.mrf.mxu0
    %v579 = vadd.f32 0.0, %v578
    %580 = vmatmul.f32.gmra.mxu0 %v327
    %v581 = vpop.f32.mrf.mxu0
    %v582 = vadd.f32 0.0, %v581
    %583 = vmatmul.f32.gmra.mxu0 %v328
    %v584 = vpop.f32.mrf.mxu0
    %v585 = vadd.f32 0.0, %v584
    %586 = vmatmul.f32.gmra.mxu0 %v329
    %v587 = vpop.f32.mrf.mxu0
    %v588 = vadd.f32 0.0, %v587
    %589 = vmatmul.f32.gmra.mxu0 %v330
    %v590 = vpop.f32.mrf.mxu0
    %v591 = vadd.f32 0.0, %v590
    %592 = vmatmul.f32.gmra.mxu0 %v331
    %v593 = vpop.f32.mrf.mxu0
    %v594 = vadd.f32 0.0, %v593
    %595 = vmatmul.f32.gmra.mxu0 %v332
    %v596 = vpop.f32.mrf.mxu0
    %v597 = vadd.f32 0.0, %v596
    %598 = vmatmul.f32.gmra.mxu0 %v333
    %v599 = vpop.f32.mrf.mxu0
    %v600 = vadd.f32 0.0, %v599
    %601 = vmatmul.f32.gmra.mxu0 %v334
    %v602 = vpop.f32.mrf.mxu0
    %v603 = vadd.f32 0.0, %v602
    %604 = vmatmul.f32.gmra.mxu0 %v335
    %v605 = vpop.f32.mrf.mxu0
    %v606 = vadd.f32 0.0, %v605
    %607 = vmatmul.f32.gmra.mxu0 %v336
    %v608 = vpop.f32.mrf.mxu0
    %v609 = vadd.f32 0.0, %v608
    %610 = vdwg.mxu0
    %611 = vmatpush.msra.mxu0 %v481
    %612 = vmatpush.msra.mxu0 %v480
    %613 = vmatpush.msra.mxu0 %v479
    %614 = vmatpush.msra.mxu0 %v478
    %615 = vmatpush.msra.mxu0 %v477
    %616 = vmatpush.msra.mxu0 %v476
    %617 = vmatpush.msra.mxu0 %v475
    %618 = vmatpush.msra.mxu0 %v474
    %619 = vmatpush.msra.mxu0 %v473
    %620 = vmatpush.msra.mxu0 %v472
    %621 = vmatpush.msra.mxu0 %v471
    %622 = vmatpush.msra.mxu0 %v470
    %623 = vmatpush.msra.mxu0 %v469
    %624 = vmatpush.msra.mxu0 %v468
    %625 = vmatpush.msra.mxu0 %v467
    %626 = vmatpush.msra.mxu0 %v466
    %627 = vmatmul.f32.gmra.mxu0 %v371
    %v628 = vpop.f32.mrf.mxu0
    %v629 = vadd.f32 %v516, %v628
    %630 = vmatmul.f32.gmra.mxu0 %v374
    %v631 = vpop.f32.mrf.mxu0
    %v632 = vadd.f32 %v519, %v631
    %633 = vmatmul.f32.gmra.mxu0 %v377
    %v634 = vpop.f32.mrf.mxu0
    %v635 = vadd.f32 %v522, %v634
    %636 = vmatmul.f32.gmra.mxu0 %v380
    %v637 = vpop.f32.mrf.mxu0
    %v638 = vadd.f32 %v525, %v637
    %639 = vmatmul.f32.gmra.mxu0 %v383
    %v640 = vpop.f32.mrf.mxu0
    %v641 = vadd.f32 %v528, %v640
    %642 = vmatmul.f32.gmra.mxu0 %v386
    %v643 = vpop.f32.mrf.mxu0
    %v644 = vadd.f32 %v531, %v643
    %645 = vmatmul.f32.gmra.mxu0 %v389
    %v646 = vpop.f32.mrf.mxu0
    %v647 = vadd.f32 %v534, %v646
    %648 = vmatmul.f32.gmra.mxu0 %v392
    %v649 = vpop.f32.mrf.mxu0
    %v650 = vadd.f32 %v537, %v649
    %651 = vmatmul.f32.gmra.mxu0 %v395
    %v652 = vpop.f32.mrf.mxu0
    %v653 = vadd.f32 %v540, %v652
    %654 = vmatmul.f32.gmra.mxu0 %v398
    %v655 = vpop.f32.mrf.mxu0
    %v656 = vadd.f32 %v543, %v655
    %657 = vmatmul.f32.gmra.mxu0 %v401
    %v658 = vpop.f32.mrf.mxu0
    %v659 = vadd.f32 %v546, %v658
    %660 = vmatmul.f32.gmra.mxu0 %v404
    %v661 = vpop.f32.mrf.mxu0
    %v662 = vadd.f32 %v549, %v661
    %663 = vmatmul.f32.gmra.mxu0 %v407
    %v664 = vpop.f32.mrf.mxu0
    %v665 = vadd.f32 %v552, %v664
    %666 = vmatmul.f32.gmra.mxu0 %v410
    %v667 = vpop.f32.mrf.mxu0
    %v668 = vadd.f32 %v555, %v667
    %669 = vmatmul.f32.gmra.mxu0 %v413
    %v670 = vpop.f32.mrf.mxu0
    %v671 = vadd.f32 %v558, %v670
    %672 = vmatmul.f32.gmra.mxu0 %v416
    %v673 = vpop.f32.mrf.mxu0
    %v674 = vadd.f32 %v561, %v673
    %675 = vmatmul.f32.gmra.mxu0 %v419
    %v676 = vpop.f32.mrf.mxu0
    %v677 = vadd.f32 %v564, %v676
    %678 = vmatmul.f32.gmra.mxu0 %v422
    %v679 = vpop.f32.mrf.mxu0
    %v680 = vadd.f32 %v567, %v679
    %681 = vmatmul.f32.gmra.mxu0 %v425
    %v682 = vpop.f32.mrf.mxu0
    %v683 = vadd.f32 %v570, %v682
    %684 = vmatmul.f32.gmra.mxu0 %v428
    %v685 = vpop.f32.mrf.mxu0
    %v686 = vadd.f32 %v573, %v685
    %687 = vmatmul.f32.gmra.mxu0 %v431
    %v688 = vpop.f32.mrf.mxu0
    %v689 = vadd.f32 %v576, %v688
    %690 = vmatmul.f32.gmra.mxu0 %v434
    %v691 = vpop.f32.mrf.mxu0
    %v692 = vadd.f32 %v579, %v691
    %693 = vmatmul.f32.gmra.mxu0 %v437
    %v694 = vpop.f32.mrf.mxu0
    %v695 = vadd.f32 %v582, %v694
    %696 = vmatmul.f32.gmra.mxu0 %v440
    %v697 = vpop.f32.mrf.mxu0
    %v698 = vadd.f32 %v585, %v697
    %699 = vmatmul.f32.gmra.mxu0 %v443
    %v700 = vpop.f32.mrf.mxu0
    %v701 = vadd.f32 %v588, %v700
    %702 = vmatmul.f32.gmra.mxu0 %v446
    %v703 = vpop.f32.mrf.mxu0
    %v704 = vadd.f32 %v591, %v703
    %705 = vmatmul.f32.gmra.mxu0 %v449
    %v706 = vpop.f32.mrf.mxu0
    %v707 = vadd.f32 %v594, %v706
    %708 = vmatmul.f32.gmra.mxu0 %v452
    %v709 = vpop.f32.mrf.mxu0
    %v710 = vadd.f32 %v597, %v709
    %711 = vmatmul.f32.gmra.mxu0 %v455
    %v712 = vpop.f32.mrf.mxu0
    %v713 = vadd.f32 %v600, %v712
    %714 = vmatmul.f32.gmra.mxu0 %v458
    %v715 = vpop.f32.mrf.mxu0
    %v716 = vadd.f32 %v603, %v715
    %717 = vmatmul.f32.gmra.mxu0 %v461
    %v718 = vpop.f32.mrf.mxu0
    %v719 = vadd.f32 %v606, %v718
    %720 = vmatmul.f32.gmra.mxu0 %v464
    %v721 = vpop.f32.mrf.mxu0
    %v722 = vadd.f32 %v609, %v721
    %723 = vdwg.mxu0
    %v724 = vld [vmem:[%s7] sm:$0x1]
    %v726 = vperm.slane %v724, 0
    %v728 = vadd.f32 %v629, %v726
    %v729 = vadd.f32 %v632, %v726
    %v730 = vadd.f32 %v635, %v726
    %v731 = vadd.f32 %v638, %v726
    %v732 = vadd.f32 %v641, %v726
    %v733 = vadd.f32 %v644, %v726
    %v734 = vadd.f32 %v647, %v726
    %v735 = vadd.f32 %v650, %v726
    %v736 = vadd.f32 %v653, %v726
    %v737 = vadd.f32 %v656, %v726
    %v738 = vadd.f32 %v659, %v726
    %v739 = vadd.f32 %v662, %v726
    %v740 = vadd.f32 %v665, %v726
    %v741 = vadd.f32 %v668, %v726
    %v742 = vadd.f32 %v671, %v726
    %v743 = vadd.f32 %v674, %v726
    %v744 = vadd.f32 %v677, %v726
    %v745 = vadd.f32 %v680, %v726
    %v746 = vadd.f32 %v683, %v726
    %v747 = vadd.f32 %v686, %v726
    %v748 = vadd.f32 %v689, %v726
    %v749 = vadd.f32 %v692, %v726
    %v750 = vadd.f32 %v695, %v726
    %v751 = vadd.f32 %v698, %v726
    %v752 = vadd.f32 %v701, %v726
    %v753 = vadd.f32 %v704, %v726
    %v754 = vadd.f32 %v707, %v726
    %v755 = vadd.f32 %v710, %v726
    %v756 = vadd.f32 %v713, %v726
    %v757 = vadd.f32 %v716, %v726
    %v758 = vadd.f32 %v719, %v726
    %v759 = vadd.f32 %v722, %v726
    %v760 = vld [vmem:[#allocation14] sm:$0xff]
    %v761 = vld [vmem:[#allocation14 + $0x8] sm:$0xff]
    %v762 = vld [vmem:[#allocation14 + $0x10] sm:$0xff]
    %v763 = vld [vmem:[#allocation14 + $0x18] sm:$0xff]
    %v764 = vld [vmem:[#allocation14 + $0x20] sm:$0xff]
    %v765 = vld [vmem:[#allocation14 + $0x28] sm:$0xff]
    %v766 = vld [vmem:[#allocation14 + $0x30] sm:$0xff]
    %v767 = vld [vmem:[#allocation14 + $0x38] sm:$0xff]
    %v768 = vld [vmem:[#allocation14 + $0x40] sm:$0xff]
    %v769 = vld [vmem:[#allocation14 + $0x48] sm:$0xff]
    %v770 = vld [vmem:[#allocation14 + $0x50] sm:$0xff]
    %v771 = vld [vmem:[#allocation14 + $0x58] sm:$0xff]
    %v772 = vld [vmem:[#allocation14 + $0x60] sm:$0xff]
    %v773 = vld [vmem:[#allocation14 + $0x68] sm:$0xff]
    %v774 = vld [vmem:[#allocation14 + $0x70] sm:$0xff]
    %v775 = vld [vmem:[#allocation14 + $0x78] sm:$0xff]
    %776 = vxpose.xlu0.b32.start [1/16] %v273, 128
    %777 = vxpose.xlu0.b32.cont [2/16] %v274, 128
    %778 = vxpose.xlu0.b32.cont [3/16] %v275, 128
    %779 = vxpose.xlu0.b32.cont [4/16] %v276, 128
    %780 = vxpose.xlu0.b32.cont [5/16] %v277, 128
    %781 = vxpose.xlu0.b32.cont [6/16] %v278, 128
    %782 = vxpose.xlu0.b32.cont [7/16] %v279, 128
    %783 = vxpose.xlu0.b32.cont [8/16] %v280, 128
    %784 = vxpose.xlu0.b32.cont [9/16] %v281, 128
    %785 = vxpose.xlu0.b32.cont [10/16] %v282, 128
    %786 = vxpose.xlu0.b32.cont [11/16] %v283, 128
    %787 = vxpose.xlu0.b32.cont [12/16] %v284, 128
    %788 = vxpose.xlu0.b32.cont [13/16] %v285, 128
    %789 = vxpose.xlu0.b32.cont [14/16] %v286, 128
    %790 = vxpose.xlu0.b32.cont [15/16] %v287, 128
    %791 = vxpose.xlu0.b32.end [16/16] %v288, 128
    %v792 = vpop.trf.xlu0
    %v793 = vpop.trf.xlu0
    %v794 = vpop.trf.xlu0
    %v795 = vpop.trf.xlu0
    %v796 = vpop.trf.xlu0
    %v797 = vpop.trf.xlu0
    %v798 = vpop.trf.xlu0
    %v799 = vpop.trf.xlu0
    %v800 = vpop.trf.xlu0
    %v801 = vpop.trf.xlu0
    %v802 = vpop.trf.xlu0
    %v803 = vpop.trf.xlu0
    %v804 = vpop.trf.xlu0
    %v805 = vpop.trf.xlu0
    %v806 = vpop.trf.xlu0
    %v807 = vpop.trf.xlu0
    %808 = vxpose.xlu0.b32.start [1/16] %v289, 128
    %809 = vxpose.xlu0.b32.cont [2/16] %v290, 128
    %810 = vxpose.xlu0.b32.cont [3/16] %v291, 128
    %811 = vxpose.xlu0.b32.cont [4/16] %v292, 128
    %812 = vxpose.xlu0.b32.cont [5/16] %v293, 128
    %813 = vxpose.xlu0.b32.cont [6/16] %v294, 128
    %814 = vxpose.xlu0.b32.cont [7/16] %v295, 128
    %815 = vxpose.xlu0.b32.cont [8/16] %v296, 128
    %816 = vxpose.xlu0.b32.cont [9/16] %v297, 128
    %817 = vxpose.xlu0.b32.cont [10/16] %v298, 128
    %818 = vxpose.xlu0.b32.cont [11/16] %v299, 128
    %819 = vxpose.xlu0.b32.cont [12/16] %v300, 128
    %820 = vxpose.xlu0.b32.cont [13/16] %v301, 128
    %821 = vxpose.xlu0.b32.cont [14/16] %v302, 128
    %822 = vxpose.xlu0.b32.cont [15/16] %v303, 128
    %823 = vxpose.xlu0.b32.end [16/16] %v304, 128
    %v824 = vpop.trf.xlu0
    %v825 = vpop.trf.xlu0
    %v826 = vpop.trf.xlu0
    %v827 = vpop.trf.xlu0
    %v828 = vpop.trf.xlu0
    %v829 = vpop.trf.xlu0
    %v830 = vpop.trf.xlu0
    %v831 = vpop.trf.xlu0
    %v832 = vpop.trf.xlu0
    %v833 = vpop.trf.xlu0
    %v834 = vpop.trf.xlu0
    %v835 = vpop.trf.xlu0
    %v836 = vpop.trf.xlu0
    %v837 = vpop.trf.xlu0
    %v838 = vpop.trf.xlu0
    %v839 = vpop.trf.xlu0
    %840 = vmatpush.msra.mxu0 %v743
    %841 = vmatpush.msra.mxu0 %v742
    %842 = vmatpush.msra.mxu0 %v741
    %843 = vmatpush.msra.mxu0 %v740
    %844 = vmatpush.msra.mxu0 %v739
    %845 = vmatpush.msra.mxu0 %v738
    %846 = vmatpush.msra.mxu0 %v737
    %847 = vmatpush.msra.mxu0 %v736
    %848 = vmatpush.msra.mxu0 %v735
    %849 = vmatpush.msra.mxu0 %v734
    %850 = vmatpush.msra.mxu0 %v733
    %851 = vmatpush.msra.mxu0 %v732
    %852 = vmatpush.msra.mxu0 %v731
    %853 = vmatpush.msra.mxu0 %v730
    %854 = vmatpush.msra.mxu0 %v729
    %855 = vmatpush.msra.mxu0 %v728
    %856 = vmatmul.f32.gmra.mxu0 %v792
    %v857 = vpop.f32.mrf.mxu0
    %v858 = vadd.f32 0.0, %v857
    %859 = vmatmul.f32.gmra.mxu0 %v793
    %v860 = vpop.f32.mrf.mxu0
    %v861 = vadd.f32 0.0, %v860
    %862 = vmatmul.f32.gmra.mxu0 %v794
    %v863 = vpop.f32.mrf.mxu0
    %v864 = vadd.f32 0.0, %v863
    %865 = vmatmul.f32.gmra.mxu0 %v795
    %v866 = vpop.f32.mrf.mxu0
    %v867 = vadd.f32 0.0, %v866
    %868 = vmatmul.f32.gmra.mxu0 %v796
    %v869 = vpop.f32.mrf.mxu0
    %v870 = vadd.f32 0.0, %v869
    %871 = vmatmul.f32.gmra.mxu0 %v797
    %v872 = vpop.f32.mrf.mxu0
    %v873 = vadd.f32 0.0, %v872
    %874 = vmatmul.f32.gmra.mxu0 %v798
    %v875 = vpop.f32.mrf.mxu0
    %v876 = vadd.f32 0.0, %v875
    %877 = vmatmul.f32.gmra.mxu0 %v799
    %v878 = vpop.f32.mrf.mxu0
    %v879 = vadd.f32 0.0, %v878
    %880 = vmatmul.f32.gmra.mxu0 %v800
    %v881 = vpop.f32.mrf.mxu0
    %v882 = vadd.f32 0.0, %v881
    %883 = vmatmul.f32.gmra.mxu0 %v801
    %v884 = vpop.f32.mrf.mxu0
    %v885 = vadd.f32 0.0, %v884
    %886 = vmatmul.f32.gmra.mxu0 %v802
    %v887 = vpop.f32.mrf.mxu0
    %v888 = vadd.f32 0.0, %v887
    %889 = vmatmul.f32.gmra.mxu0 %v803
    %v890 = vpop.f32.mrf.mxu0
    %v891 = vadd.f32 0.0, %v890
    %892 = vmatmul.f32.gmra.mxu0 %v804
    %v893 = vpop.f32.mrf.mxu0
    %v894 = vadd.f32 0.0, %v893
    %895 = vmatmul.f32.gmra.mxu0 %v805
    %v896 = vpop.f32.mrf.mxu0
    %v897 = vadd.f32 0.0, %v896
    %898 = vmatmul.f32.gmra.mxu0 %v806
    %v899 = vpop.f32.mrf.mxu0
    %v900 = vadd.f32 0.0, %v899
    %901 = vmatmul.f32.gmra.mxu0 %v807
    %v902 = vpop.f32.mrf.mxu0
    %v903 = vadd.f32 0.0, %v902
    %904 = vdwg.mxu0
    %905 = vmatpush.msra.mxu0 %v759
    %906 = vmatpush.msra.mxu0 %v758
    %907 = vmatpush.msra.mxu0 %v757
    %908 = vmatpush.msra.mxu0 %v756
    %909 = vmatpush.msra.mxu0 %v755
    %910 = vmatpush.msra.mxu0 %v754
    %911 = vmatpush.msra.mxu0 %v753
    %912 = vmatpush.msra.mxu0 %v752
    %913 = vmatpush.msra.mxu0 %v751
    %914 = vmatpush.msra.mxu0 %v750
    %915 = vmatpush.msra.mxu0 %v749
    %916 = vmatpush.msra.mxu0 %v748
    %917 = vmatpush.msra.mxu0 %v747
    %918 = vmatpush.msra.mxu0 %v746
    %919 = vmatpush.msra.mxu0 %v745
    %920 = vmatpush.msra.mxu0 %v744
    %921 = vmatmul.f32.gmra.mxu0 %v824
    %v922 = vpop.f32.mrf.mxu0
    %v923 = vadd.f32 %v858, %v922
    %924 = vmatmul.f32.gmra.mxu0 %v825
    %v925 = vpop.f32.mrf.mxu0
    %v926 = vadd.f32 %v861, %v925
    %927 = vmatmul.f32.gmra.mxu0 %v826
    %v928 = vpop.f32.mrf.mxu0
    %v929 = vadd.f32 %v864, %v928
    %930 = vmatmul.f32.gmra.mxu0 %v827
    %v931 = vpop.f32.mrf.mxu0
    %v932 = vadd.f32 %v867, %v931
    %933 = vmatmul.f32.gmra.mxu0 %v828
    %v934 = vpop.f32.mrf.mxu0
    %v935 = vadd.f32 %v870, %v934
    %936 = vmatmul.f32.gmra.mxu0 %v829
    %v937 = vpop.f32.mrf.mxu0
    %v938 = vadd.f32 %v873, %v937
    %939 = vmatmul.f32.gmra.mxu0 %v830
    %v940 = vpop.f32.mrf.mxu0
    %v941 = vadd.f32 %v876, %v940
    %942 = vmatmul.f32.gmra.mxu0 %v831
    %v943 = vpop.f32.mrf.mxu0
    %v944 = vadd.f32 %v879, %v943
    %945 = vmatmul.f32.gmra.mxu0 %v832
    %v946 = vpop.f32.mrf.mxu0
    %v947 = vadd.f32 %v882, %v946
    %948 = vmatmul.f32.gmra.mxu0 %v833
    %v949 = vpop.f32.mrf.mxu0
    %v950 = vadd.f32 %v885, %v949
    %951 = vmatmul.f32.gmra.mxu0 %v834
    %v952 = vpop.f32.mrf.mxu0
    %v953 = vadd.f32 %v888, %v952
    %954 = vmatmul.f32.gmra.mxu0 %v835
    %v955 = vpop.f32.mrf.mxu0
    %v956 = vadd.f32 %v891, %v955
    %957 = vmatmul.f32.gmra.mxu0 %v836
    %v958 = vpop.f32.mrf.mxu0
    %v959 = vadd.f32 %v894, %v958
    %960 = vmatmul.f32.gmra.mxu0 %v837
    %v961 = vpop.f32.mrf.mxu0
    %v962 = vadd.f32 %v897, %v961
    %963 = vmatmul.f32.gmra.mxu0 %v838
    %v964 = vpop.f32.mrf.mxu0
    %v965 = vadd.f32 %v900, %v964
    %966 = vmatmul.f32.gmra.mxu0 %v839
    %v967 = vpop.f32.mrf.mxu0
    %v968 = vadd.f32 %v903, %v967
    %969 = vdwg.mxu0
    %v970 = vadd.f32 %v760, %v923
    %v971 = vadd.f32 %v761, %v926
    %v972 = vadd.f32 %v762, %v929
    %v973 = vadd.f32 %v763, %v932
    %v974 = vadd.f32 %v764, %v935
    %v975 = vadd.f32 %v765, %v938
    %v976 = vadd.f32 %v766, %v941
    %v977 = vadd.f32 %v767, %v944
    %v978 = vadd.f32 %v768, %v947
    %v979 = vadd.f32 %v769, %v950
    %v980 = vadd.f32 %v770, %v953
    %v981 = vadd.f32 %v771, %v956
    %v982 = vadd.f32 %v772, %v959
    %v983 = vadd.f32 %v773, %v962
    %v984 = vadd.f32 %v774, %v965
    %v985 = vadd.f32 %v775, %v968
    %986 = vst [vmem:[#allocation14] sm:$0xff] %v970
    %987 = vst [vmem:[#allocation14 + $0x8] sm:$0xff] %v971
    %988 = vst [vmem:[#allocation14 + $0x10] sm:$0xff] %v972
    %989 = vst [vmem:[#allocation14 + $0x18] sm:$0xff] %v973
    %990 = vst [vmem:[#allocation14 + $0x20] sm:$0xff] %v974
    %991 = vst [vmem:[#allocation14 + $0x28] sm:$0xff] %v975
    %992 = vst [vmem:[#allocation14 + $0x30] sm:$0xff] %v976
    %993 = vst [vmem:[#allocation14 + $0x38] sm:$0xff] %v977
    %994 = vst [vmem:[#allocation14 + $0x40] sm:$0xff] %v978
    %995 = vst [vmem:[#allocation14 + $0x48] sm:$0xff] %v979
    %996 = vst [vmem:[#allocation14 + $0x50] sm:$0xff] %v980
    %997 = vst [vmem:[#allocation14 + $0x58] sm:$0xff] %v981
    %998 = vst [vmem:[#allocation14 + $0x60] sm:$0xff] %v982
    %999 = vst [vmem:[#allocation14 + $0x68] sm:$0xff] %v983
    %1000 = vst [vmem:[#allocation14 + $0x70] sm:$0xff] %v984
    %1001 = vst [vmem:[#allocation14 + $0x78] sm:$0xff] %v985
    %p1002 = scmp.eq.s32.totalorder 0, 0
    %p1003 = pnand %p1002, %p157
    %p1004 = pneg %p1003
    // Predicated region
    $region66: #{tpu_custom_call.1} parent=1 // pred_check
      _
    $region67: #{tpu_custom_call.1} parent=1 // pred_check_branch
      %1006 = sbr.rel (%p1003) target = $region69
    $region68: #{tpu_custom_call.1} parent=1 // pred_region
      %v1007 = vld [vmem:[#allocation14] sm:$0xff]
      %v1008 = vld [vmem:[#allocation14 + $0x8] sm:$0xff]
      %v1009 = vld [vmem:[#allocation14 + $0x10] sm:$0xff]
      %v1010 = vld [vmem:[#allocation14 + $0x18] sm:$0xff]
      %v1011 = vld [vmem:[#allocation14 + $0x20] sm:$0xff]
      %v1012 = vld [vmem:[#allocation14 + $0x28] sm:$0xff]
      %v1013 = vld [vmem:[#allocation14 + $0x30] sm:$0xff]
      %v1014 = vld [vmem:[#allocation14 + $0x38] sm:$0xff]
      %v1015 = vld [vmem:[#allocation14 + $0x40] sm:$0xff]
      %v1016 = vld [vmem:[#allocation14 + $0x48] sm:$0xff]
      %v1017 = vld [vmem:[#allocation14 + $0x50] sm:$0xff]
      %v1018 = vld [vmem:[#allocation14 + $0x58] sm:$0xff]
      %v1019 = vld [vmem:[#allocation14 + $0x60] sm:$0xff]
      %v1020 = vld [vmem:[#allocation14 + $0x68] sm:$0xff]
      %v1021 = vld [vmem:[#allocation14 + $0x70] sm:$0xff]
      %v1022 = vld [vmem:[#allocation14 + $0x78] sm:$0xff]
      %v1023 = vld [vmem:[#allocation10] sm:$0xff]
      %v1024 = vld [vmem:[#allocation10 + $0x8] sm:$0xff]
      %v1025 = vld [vmem:[#allocation10 + $0x10] sm:$0xff]
      %v1026 = vld [vmem:[#allocation10 + $0x18] sm:$0xff]
      %v1027 = vld [vmem:[#allocation10 + $0x20] sm:$0xff]
      %v1028 = vld [vmem:[#allocation10 + $0x28] sm:$0xff]
      %v1029 = vld [vmem:[#allocation10 + $0x30] sm:$0xff]
      %v1030 = vld [vmem:[#allocation10 + $0x38] sm:$0xff]
      %v1031 = vld [vmem:[#allocation10 + $0x40] sm:$0xff]
      %v1032 = vld [vmem:[#allocation10 + $0x48] sm:$0xff]
      %v1033 = vld [vmem:[#allocation10 + $0x50] sm:$0xff]
      %v1034 = vld [vmem:[#allocation10 + $0x58] sm:$0xff]
      %v1035 = vld [vmem:[#allocation10 + $0x60] sm:$0xff]
      %v1036 = vld [vmem:[#allocation10 + $0x68] sm:$0xff]
      %v1037 = vld [vmem:[#allocation10 + $0x70] sm:$0xff]
      %v1038 = vld [vmem:[#allocation10 + $0x78] sm:$0xff]
      %1039 = vmatpush.msra.mxu0 %v1038
      %1040 = vmatpush.msra.mxu0 %v1037
      %1041 = vmatpush.msra.mxu0 %v1036
      %1042 = vmatpush.msra.mxu0 %v1035
      %1043 = vmatpush.msra.mxu0 %v1034
      %1044 = vmatpush.msra.mxu0 %v1033
      %1045 = vmatpush.msra.mxu0 %v1032
      %1046 = vmatpush.msra.mxu0 %v1031
      %1047 = vmatpush.msra.mxu0 %v1030
      %1048 = vmatpush.msra.mxu0 %v1029
      %1049 = vmatpush.msra.mxu0 %v1028
      %1050 = vmatpush.msra.mxu0 %v1027
      %1051 = vmatpush.msra.mxu0 %v1026
      %1052 = vmatpush.msra.mxu0 %v1025
      %1053 = vmatpush.msra.mxu0 %v1024
      %1054 = vmatpush.msra.mxu0 %v1023
      %1055 = vmatmul.f32.gmra.mxu0 %v337
      %v1056 = vpop.f32.mrf.mxu0
      %v1057 = vadd.f32 0.0, %v1056
      %1058 = vmatmul.f32.gmra.mxu0 %v338
      %v1059 = vpop.f32.mrf.mxu0
      %v1060 = vadd.f32 0.0, %v1059
      %1061 = vmatmul.f32.gmra.mxu0 %v339
      %v1062 = vpop.f32.mrf.mxu0
      %v1063 = vadd.f32 0.0, %v1062
      %1064 = vmatmul.f32.gmra.mxu0 %v340
      %v1065 = vpop.f32.mrf.mxu0
      %v1066 = vadd.f32 0.0, %v1065
      %1067 = vmatmul.f32.gmra.mxu0 %v341
      %v1068 = vpop.f32.mrf.mxu0
      %v1069 = vadd.f32 0.0, %v1068
      %1070 = vmatmul.f32.gmra.mxu0 %v342
      %v1071 = vpop.f32.mrf.mxu0
      %v1072 = vadd.f32 0.0, %v1071
      %1073 = vmatmul.f32.gmra.mxu0 %v343
      %v1074 = vpop.f32.mrf.mxu0
      %v1075 = vadd.f32 0.0, %v1074
      %1076 = vmatmul.f32.gmra.mxu0 %v344
      %v1077 = vpop.f32.mrf.mxu0
      %v1078 = vadd.f32 0.0, %v1077
      %1079 = vmatmul.f32.gmra.mxu0 %v345
      %v1080 = vpop.f32.mrf.mxu0
      %v1081 = vadd.f32 0.0, %v1080
      %1082 = vmatmul.f32.gmra.mxu0 %v346
      %v1083 = vpop.f32.mrf.mxu0
      %v1084 = vadd.f32 0.0, %v1083
      %1085 = vmatmul.f32.gmra.mxu0 %v347
      %v1086 = vpop.f32.mrf.mxu0
      %v1087 = vadd.f32 0.0, %v1086
      %1088 = vmatmul.f32.gmra.mxu0 %v348
      %v1089 = vpop.f32.mrf.mxu0
      %v1090 = vadd.f32 0.0, %v1089
      %1091 = vmatmul.f32.gmra.mxu0 %v349
      %v1092 = vpop.f32.mrf.mxu0
      %v1093 = vadd.f32 0.0, %v1092
      %1094 = vmatmul.f32.gmra.mxu0 %v350
      %v1095 = vpop.f32.mrf.mxu0
      %v1096 = vadd.f32 0.0, %v1095
      %1097 = vmatmul.f32.gmra.mxu0 %v351
      %v1098 = vpop.f32.mrf.mxu0
      %v1099 = vadd.f32 0.0, %v1098
      %1100 = vmatmul.f32.gmra.mxu0 %v352
      %v1101 = vpop.f32.mrf.mxu0
      %v1102 = vadd.f32 0.0, %v1101
      %1103 = vdwg.mxu0
      %v1104 = vadd.f32 %v1007, %v1057
      %v1105 = vadd.f32 %v1008, %v1060
      %v1106 = vadd.f32 %v1009, %v1063
      %v1107 = vadd.f32 %v1010, %v1066
      %v1108 = vadd.f32 %v1011, %v1069
      %v1109 = vadd.f32 %v1012, %v1072
      %v1110 = vadd.f32 %v1013, %v1075
      %v1111 = vadd.f32 %v1014, %v1078
      %v1112 = vadd.f32 %v1015, %v1081
      %v1113 = vadd.f32 %v1016, %v1084
      %v1114 = vadd.f32 %v1017, %v1087
      %v1115 = vadd.f32 %v1018, %v1090
      %v1116 = vadd.f32 %v1019, %v1093
      %v1117 = vadd.f32 %v1020, %v1096
      %v1118 = vadd.f32 %v1021, %v1099
      %v1119 = vadd.f32 %v1022, %v1102
      %1120 = vst [vmem:[#allocation14] sm:$0xff] %v1104
      %1121 = vst [vmem:[#allocation14 + $0x8] sm:$0xff] %v1105
      %1122 = vst [vmem:[#allocation14 + $0x10] sm:$0xff] %v1106
      %1123 = vst [vmem:[#allocation14 + $0x18] sm:$0xff] %v1107
      %1124 = vst [vmem:[#allocation14 + $0x20] sm:$0xff] %v1108
      %1125 = vst [vmem:[#allocation14 + $0x28] sm:$0xff] %v1109
      %1126 = vst [vmem:[#allocation14 + $0x30] sm:$0xff] %v1110
      %1127 = vst [vmem:[#allocation14 + $0x38] sm:$0xff] %v1111
      %1128 = vst [vmem:[#allocation14 + $0x40] sm:$0xff] %v1112
      %1129 = vst [vmem:[#allocation14 + $0x48] sm:$0xff] %v1113
      %1130 = vst [vmem:[#allocation14 + $0x50] sm:$0xff] %v1114
      %1131 = vst [vmem:[#allocation14 + $0x58] sm:$0xff] %v1115
      %1132 = vst [vmem:[#allocation14 + $0x60] sm:$0xff] %v1116
      %1133 = vst [vmem:[#allocation14 + $0x68] sm:$0xff] %v1117
      %1134 = vst [vmem:[#allocation14 + $0x70] sm:$0xff] %v1118
      %1135 = vst [vmem:[#allocation14 + $0x78] sm:$0xff] %v1119
    $region69: #{tpu_custom_call.1} parent=1 // pred_fallthru
      _
    // Predicated region
    $region70: #{tpu_custom_call.1} parent=1 // pred_check
      _
    $region71: #{tpu_custom_call.1} parent=1 // pred_check_branch
      %1137 = sbr.rel (0) target = $region73
    $region72: #{tpu_custom_call.1} parent=1 // pred_region
      %1139 = vsyncadd [#allocation4], 0
      %s1140 = sshll.u32 [#allocation14], 4
      %s1141 = int_to_ptr.vmem [resolvable:$true] %s1140
      %s1142 = sshll.u32 %s8, 4
      %s1143 = int_to_ptr.hbm [resolvable:$true] %s1142
      %1148 = dma.vmem_to_hbm [thread:$0]  %s1141, 2048, %s1143, [#allocation4], 128, 128, 8
    $region73: #{tpu_custom_call.1} parent=1 // pred_fallthru
      _
    // Predicated region
    $region74: #{tpu_custom_call.1} parent=1 // pred_check
      _
    $region75: #{tpu_custom_call.1} parent=1 // pred_check_branch
      %1150 = sbr.rel (0) target = $region77
    $region76: #{tpu_custom_call.1} parent=1 // pred_region
      %1152 = dma.done [#allocation4], 2048
    $region77: #{tpu_custom_call.1} parent=1 // pred_fallthru
      _
    %1153 = vsyncpa [#allocation3], 1
    %1154 = vsyncpa [#allocation6], 1
    %1155 = vsyncpa [#allocation9], 1
    %1156 = vsyncpa [#allocation12], 1
    %1157 = vsyncpa [#allocation4], 1

</llo_original>
